<compile_context>
chip_gen: v7x
topology: tpu7x:2x2x1
jax: 0.10.0
libtpu: 0.0.40
codegen_flags: <defaults>
</compile_context>

<pallas_src>
import functools

import jax
import jax.numpy as jnp
import numpy as np
from jax.experimental import pallas as pl
from jax.experimental.pallas import tpu as pltpu


def _round_up(x, m):
    return (x + m - 1) // m * m


def _rq_kernel(x_ref, cb_ref, cbt_ref, cbn_ref, quant_ref, codes_ref, sqerr_ref,
               *, depth, n_rows, tile_n, exact, fused_argmin, mask_rows):
    """Residual quantization over one tile of rows.

    x_ref:     (tile_n, E)              input features (code-shaped, flattened; E unpadded)
    cb_ref:    (depth, K_pad, E)        codebooks, gather layout (compute dtype)
    cbt_ref:   (depth, E, K_pad)        codebooks, pre-transposed for the distance matmul
    cbn_ref:   (depth, K_pad)  f32      precomputed 0.5*||c||^2 (padded rows = huge)
    quant_ref: (tile_n, E)              aggregated quantized features (last level)
    codes_ref: (tile_n, depth) int32    selected code indices per level
    sqerr_ref: (depth, 128)    f32      per-tile, per-level sum((x - agg_level)^2); the scalar
                                        is replicated across all 128 lanes of row d, and the
                                        host reads one lane per tile via sqerr[:, ::128].
    """
    x = x_ref[...].astype(jnp.float32)                       # (tile_n, E)
    n_embed_pad = cb_ref.shape[1]
    cdtype = cb_ref.dtype
    mm_prec = jax.lax.Precision.HIGHEST if exact else None

    # Invariant: after the level-d update, residual == x - aggregated_quants_d exactly,
    # so no separate `agg` accumulator or `err = x - agg` is needed.
    residual = x

    code_iota = jax.lax.broadcasted_iota(jnp.int32, (tile_n, n_embed_pad), 1)
    lane_iota_d = jax.lax.broadcasted_iota(jnp.int32, (tile_n, depth), 1)
    sub_iota_d = jax.lax.broadcasted_iota(jnp.int32, (depth, 128), 0)

    codes_tile = jnp.zeros((tile_n, depth), jnp.int32)
    sq_tile = jnp.zeros((depth, 128), jnp.float32)

    cbn_all = cbn_ref[...]                                   # (depth, K_pad) f32, tiny

    if mask_rows:
        # only the last tile has zero-padded rows; mask is applied to row sums only
        row_ids = (pl.program_id(0) * tile_n
                   + jax.lax.broadcasted_iota(jnp.int32, (tile_n, 1), 0))
        row_mask = (row_ids < n_rows).astype(jnp.float32)    # (tile_n, 1)

    # constants for the fused (packed) argmin used on the fast path
    idx_bits = max(1, (n_embed_pad - 1).bit_length())
    low_mask = (1 << idx_bits) - 1

    for d in range(depth):
        # (1) half-distances on the MXU:  0.5*||c||^2 - r.c
        #     (the row-constant ||r||^2 and the positive factor 2 don't change the argmin)
        cross = jnp.dot(residual.astype(cdtype), cbt_ref[d],
                        preferred_element_type=jnp.float32,
                        precision=mm_prec)                   # (tile_n, K_pad)
        dist = cbn_all[d:d + 1, :] - cross                   # (tile_n, K_pad) f32

        # (2) argmin over the codebook (lane) axis
        if fused_argmin:
            # fused single-reduction argmin: order-preserving int32 key, low bits hold the index
            bits = pltpu.bitcast(dist, jnp.int32)
            key = bits ^ ((bits >> 31) & 0x7FFFFFFF)         # monotone f32 -> sortable int32
            packed = (key & (~low_mask)) | code_iota
            codes_d = jnp.min(packed, axis=-1, keepdims=True) & low_mask
        else:
            # exact two-reduction argmin (first minimal index)
            min_d = jnp.min(dist, axis=-1, keepdims=True)
            codes_d = jnp.min(
                jnp.where(dist <= min_d, code_iota, n_embed_pad), axis=-1, keepdims=True
            )                                                # (tile_n, 1) int32

        # (3) codeword gather via one-hot matmul (MXU); one-hot is exact in bf16
        one_hot = (code_iota == codes_d).astype(cdtype)      # (tile_n, K_pad)
        quant = jnp.dot(one_hot, cb_ref[d],
                        preferred_element_type=jnp.float32, precision=mm_prec)
        residual = residual - quant                          # residual == x - agg_d

        # (4) commitment-loss partial sum, reduced in-kernel to one scalar per (depth, tile);
        #     mask only the (tile_n, 1) row sums, not the full tile
        row_sums = jnp.sum(residual * residual, axis=-1, keepdims=True)   # (tile_n, 1)
        if mask_rows:
            row_sums = row_sums * row_mask
        psum = jnp.sum(row_sums, axis=0, keepdims=True)      # (1, 1)
        sq_tile = sq_tile + jnp.where(sub_iota_d == d, psum, 0.0)

        # (5) codes: accumulate the d-th column by select (no 1-lane-column concatenate)
        codes_tile = jnp.where(lane_iota_d == d, codes_d, codes_tile)

    # epilogue: aggregated quantized feature recovered once (no per-depth agg accumulation)
    quant_ref[...] = (x - residual).astype(quant_ref.dtype)
    codes_ref[...] = codes_tile
    sqerr_ref[...] = sq_tile


def _to_code_shape(x, code_shape):
    B, H, W, D = x.shape
    h, w, _ = code_shape
    rH, rW = H // h, W // w
    x = x.reshape(B, h, rH, w, rW, D)
    x = jnp.transpose(x, (0, 1, 3, 2, 4, 5))
    return x.reshape(B, h, w, rH * rW * D)


def _to_latent_shape(xq, latent_shape, code_shape):
    B, h, w, _ = xq.shape
    H, W, D = latent_shape
    rH, rW = H // h, W // w
    xq = xq.reshape(B, h, w, rH, rW, D)
    xq = jnp.transpose(xq, (0, 1, 3, 2, 4, 5))
    return xq.reshape(B, h * rH, w * rW, D)


def rq_bottleneck_forward(x, codebooks, latent_shape, code_shape, tile_n=None, exact=False):
    """Forward pass of RQBottleneck (eval mode).

    Returns (quants_trunc, commitment_loss, codes).
    exact=False (default): bf16 MXU matmuls + fused argmin (fast path).
    exact=True:            f32 matmuls (precision=HIGHEST) + exact argmin.
    """
    B, H, W, D = x.shape
    h, w, depth = code_shape
    rH, rW = H // h, W // w
    embed_dim = rH * rW * D
    n_embed = codebooks.shape[1]
    assert codebooks.shape == (depth, n_embed, embed_dim)

    # --- glue: to_code_shape + flatten (trace-time layout work) ---
    x_code = _to_code_shape(x, code_shape)                   # (B, h, w, embed_dim)
    N = B * h * w
    x_flat = x_code.reshape(N, embed_dim)

    # Only the codebook K axis is padded to lane width; row data (x / quant) stays at the true
    # embed_dim (a block whose last dim equals the full array dim is legal), saving HBM traffic.
    K_pad = _round_up(n_embed, 128)

    cdtype = jnp.float32 if exact else jnp.bfloat16
    csz = jnp.dtype(cdtype).itemsize
    xsz = jnp.dtype(x.dtype).itemsize

    # --- generation-aware VMEM budget (v7x has 64 MiB/TC vs 128 MiB on v5e/v6e) ---
    try:
        vmem_cap = int(pltpu.get_tpu_info().vmem_capacity_bytes)
    except Exception:
        vmem_cap = 64 * 2 ** 20   # safe lower bound across v5e / v6e / v7x

    def kernel_vmem_bytes(tn):
        cb = depth * K_pad * (2 * embed_dim * csz + 4)       # single-buffered (Buffered(1))
        io = 2 * tn * embed_dim * (xsz + xsz) + 2 * tn * depth * 4 + 2 * depth * 128 * 4
        tmp = 4 * tn * K_pad * 4 + 4 * tn * embed_dim * 4    # dist/key/one_hot/cross + x/residual/quant
        return cb + io + tmp

    if tile_n is None:
        # large row tiles amortize the per-grid-step overhead and the per-depth MXU weight push;
        # keep >=2 grid steps so both v7x TensorCores get work under ("parallel",).
        tile_n = 512
        while tile_n > 8 and -(-N // tile_n) < 2:
            tile_n //= 2
        while tile_n > 64 and kernel_vmem_bytes(tile_n) > int(0.8 * vmem_cap):
            tile_n //= 2
    tile_n = max(8, _round_up(tile_n, 8))
    N_pad = _round_up(N, tile_n)
    num_tiles = N_pad // tile_n

    if N_pad != N:
        x_flat = jnp.pad(x_flat, ((0, N_pad - N), (0, 0)))

    cb_pad = jnp.pad(codebooks.astype(jnp.float32),
                     ((0, 0), (0, K_pad - n_embed), (0, 0)))
    cb_c = cb_pad.astype(cdtype)                             # (depth, K_pad, E)  gather layout
    cb_t = jnp.transpose(cb_c, (0, 2, 1))                    # (depth, E, K_pad)  distance layout
    # 0.5*||c||^2 folded into the norm table (argmin invariant to positive scaling);
    # padded rows get a huge value and never win the argmin.
    cb_norm = 0.5 * jnp.sum(cb_c.astype(jnp.float32) ** 2, axis=-1)      # (depth, K_pad)
    valid = (jnp.arange(K_pad) < n_embed)[None, :]
    cb_norm = jnp.where(valid, cb_norm, jnp.float32(1e30))

    # Fused argmin packs the index into the low idx_bits of the f32 distance key; near-ties
    # closer than ~2**-(23-idx_bits) relative collapse to the lower index, so fall back to the
    # exact two-reduction argmin for large codebooks (idx_bits > 10).
    fused_argmin = (not exact) and ((K_pad - 1).bit_length() <= 10)

    kernel = functools.partial(_rq_kernel, depth=depth, n_rows=N, tile_n=tile_n,
                               exact=exact, fused_argmin=fused_argmin,
                               mask_rows=(N_pad != N))

    vmem_limit = int(min(int(0.9 * vmem_cap),
                         max(32 * 2 ** 20, int(1.25 * kernel_vmem_bytes(tile_n)))))

    # TODO(synk): for production n_embed where even the single-buffered dual-layout codebooks
    # exceed ~0.8*vmem_cap (esp. v7x's 64 MiB/TC), keep them in HBM (memory_space=pl.ANY) and
    # stream K-chunks per depth with a manual double-buffered make_async_copy + online argmin.
    cb_buf = pl.Buffered(1)   # grid-invariant inputs: one VMEM buffer instead of double-buffering

    quant_flat, codes_flat, sqerr = pl.pallas_call(
        kernel,
        out_shape=(
            jax.ShapeDtypeStruct((N_pad, embed_dim), x.dtype),
            jax.ShapeDtypeStruct((N_pad, depth), jnp.int32),
            jax.ShapeDtypeStruct((depth, num_tiles * 128), jnp.float32),
        ),
        grid_spec=pltpu.PrefetchScalarGridSpec(
            num_scalar_prefetch=0,
            grid=(num_tiles,),
            in_specs=[
                pl.BlockSpec((tile_n, embed_dim), lambda i: (i, 0)),
                pl.BlockSpec((depth, K_pad, embed_dim), lambda i: (0, 0, 0),
                             pipeline_mode=cb_buf),
                pl.BlockSpec((depth, embed_dim, K_pad), lambda i: (0, 0, 0),
                             pipeline_mode=cb_buf),
                pl.BlockSpec((depth, K_pad), lambda i: (0, 0), pipeline_mode=cb_buf),
            ],
            out_specs=[
                pl.BlockSpec((tile_n, embed_dim), lambda i: (i, 0)),
                # TODO(synk): a lane-dense codes layout ((depth, N_pad) or packed int32) would
                # remove the narrow masked stores; kept as (N_pad, depth) since codes are a tiny
                # fraction of the output traffic and this layout avoids an unaligned transpose.
                pl.BlockSpec((tile_n, depth), lambda i: (i, 0)),
                pl.BlockSpec((depth, 128), lambda i: (0, i)),
            ],
        ),
        compiler_params=pltpu.CompilerParams(
            dimension_semantics=("parallel",),
            vmem_limit_bytes=vmem_limit,
        ),
    )(x_flat, cb_c, cb_t, cb_norm)

    # commitment loss: tiny finishing reduction in JAX.  Each (depth, tile) scalar is replicated
    # across its 128-lane block, so the stride-128 slice picks exactly one copy per tile.
    per_depth_sum = sqerr[:, ::128].sum(axis=1)              # (depth,)
    commitment_loss = jnp.mean(per_depth_sum / (N * embed_dim))

    # --- glue: back to latent shape + straight-through ---
    q_code = quant_flat[:N].reshape(B, h, w, embed_dim)
    q_latent = _to_latent_shape(q_code, latent_shape, code_shape)
    quants_trunc = x + jax.lax.stop_gradient(q_latent - x)
    codes = codes_flat[:N].reshape(B, h, w, depth)
    return quants_trunc, commitment_loss, codes


def _reference_forward(x, codebooks, latent_shape, code_shape):
    """Pure-JAX reference mirroring the PyTorch semantics (for a sanity check)."""
    h, w, depth = code_shape
    x_code = _to_code_shape(x, code_shape)
    B = x.shape[0]
    embed_dim = x_code.shape[-1]
    flat = x_code.reshape(-1, embed_dim).astype(jnp.float32)
    residual = flat
    agg = jnp.zeros_like(flat)
    losses = []
    code_list = []
    for d in range(depth):
        cb = codebooks[d].astype(jnp.float32)
        dist = (
            jnp.sum(residual**2, axis=-1, keepdims=True)
            + jnp.sum(cb**2, axis=-1)[None, :]
            - 2.0 * residual @ cb.T
        )
        code = jnp.argmin(dist, axis=-1)
        quant = cb[code]
        residual = residual - quant
        agg = agg + quant
        losses.append(jnp.mean((flat - agg) ** 2))
        code_list.append(code)
    loss = jnp.mean(jnp.stack(losses))
    q_latent = _to_latent_shape(agg.reshape(B, h, w, embed_dim), latent_shape, code_shape)
    codes = jnp.stack(code_list, axis=-1).reshape(B, h, w, depth)
    return q_latent.astype(x.dtype), loss, codes


if __name__ == "__main__":
    # Small deterministic example consistent with RQBottleneck:
    #   latent_shape = (16, 16, 4), code_shape = (8, 8, 3)  ->  embed_dim = 2*2*4 = 16
    B = 2
    latent_shape = (16, 16, 4)
    code_shape = (8, 8, 3)
    n_embed = 32
    depth = code_shape[-1]
    embed_dim = (latent_shape[0] // code_shape[0]) * (latent_shape[1] // code_shape[1]) * latent_shape[2]

    key = jax.random.PRNGKey(0)
    kx, kc = jax.random.split(key)
    x = jax.random.normal(kx, (B,) + latent_shape, dtype=jnp.float32)
    # nn.Embedding default init is N(0,1); the padding row (index n_embed) is never selected,
    # so only the n_embed usable rows per codebook are materialized.
    codebooks = jax.random.normal(kc, (depth, n_embed, embed_dim), dtype=jnp.float32)

    # Fast path (default): bf16 MXU matmuls + fused packed argmin.
    q_fast, loss_fast, codes_fast = rq_bottleneck_forward(x, codebooks, latent_shape, code_shape)
    jax.block_until_ready((q_fast, loss_fast, codes_fast))

    # Exact path: f32 matmuls (HIGHEST precision) + exact argmin -- strict check vs reference.
    q_ex, loss_ex, codes_ex = rq_bottleneck_forward(
        x, codebooks, latent_shape, code_shape, exact=True
    )
    jax.block_until_ready((q_ex, loss_ex, codes_ex))

    q_ref, loss_ref, codes_ref = _reference_forward(x, codebooks, latent_shape, code_shape)
    np.testing.assert_allclose(np.asarray(q_ex), np.asarray(q_ref), rtol=1e-3, atol=1e-3)
    np.testing.assert_allclose(float(loss_ex), float(loss_ref), rtol=1e-3, atol=1e-3)

    # Fast-path sanity: bf16 rounds codewords and near-tie argmins may differ, so only a
    # loose loss check + shape/finiteness checks here.
    assert q_fast.shape == x.shape
    assert codes_fast.shape == (B,) + tuple(code_shape[:2]) + (depth,)
    assert bool(jnp.all(jnp.isfinite(q_fast)))
    np.testing.assert_allclose(float(loss_fast), float(loss_ref), rtol=0.3, atol=1e-2)

    print("KERNEL_OK")
</pallas_src>

<mosaic_0001>
module attributes {stable_mosaic.version = 11 : i64} {
  func.func @_rq_kernel(%arg0: i32, %arg1: memref<64x16xf32, #tpu.memory_space<vmem>>, %arg2: memref<3x128x16xbf16, #tpu.memory_space<vmem>>, %arg3: memref<3x16x128xbf16, #tpu.memory_space<vmem>>, %arg4: memref<3x128xf32, #tpu.memory_space<vmem>>, %arg5: memref<64x16xf32, #tpu.memory_space<vmem>>, %arg6: memref<64x3xi32, #tpu.memory_space<vmem>>, %arg7: memref<3x128xf32, #tpu.memory_space<vmem>>) attributes {dimension_semantics = [#tpu.dimension_semantics<parallel>], iteration_bounds = array<i64: 2>, scalar_prefetch = 0 : i64, scratch_operands = 0 : i64, tpu.core_type = #tpu.core_type<tc>, window_params = [{transform_indices = @transform_0, window_bounds = array<i64: 64, 16>}, {pipeline_mode = #tpu.pipeline_mode<synchronous>, transform_indices = @transform_1, window_bounds = array<i64: 3, 128, 16>}, {pipeline_mode = #tpu.pipeline_mode<synchronous>, transform_indices = @transform_2, window_bounds = array<i64: 3, 16, 128>}, {pipeline_mode = #tpu.pipeline_mode<synchronous>, transform_indices = @transform_3, window_bounds = array<i64: 3, 128>}, {transform_indices = @transform_4, window_bounds = array<i64: 64, 16>}, {transform_indices = @transform_5, window_bounds = array<i64: 64, 3>}, {transform_indices = @transform_6, window_bounds = array<i64: 3, 128>}]} {
    %c0 = arith.constant 0 : index
    %c0_0 = arith.constant 0 : index
    %0 = vector.load %arg1[%c0, %c0_0] : memref<64x16xf32, #tpu.memory_space<vmem>>, vector<64x16xf32>
    %1 = tpu.iota {dimensions = array<i32: 1>} : vector<64x128xi32>
    %2 = tpu.iota {dimensions = array<i32: 1>} : vector<64x3xi32>
    %3 = tpu.iota {dimensions = array<i32: 0>} : vector<3x128xi32>
    %c0_i32 = arith.constant 0 : i32
    %4 = vector.broadcast %c0_i32 : i32 to vector<64x3xi32>
    %cst = arith.constant 0.000000e+00 : f32
    %5 = vector.broadcast %cst : f32 to vector<3x128xf32>
    %c0_1 = arith.constant 0 : index
    %c0_2 = arith.constant 0 : index
    %6 = vector.load %arg4[%c0_1, %c0_2] : memref<3x128xf32, #tpu.memory_space<vmem>>, vector<3x128xf32>
    %7 = arith.truncf %0 : vector<64x16xf32> to vector<64x16xbf16>
    %c0_3 = arith.constant 0 : index
    %c0_4 = arith.constant 0 : index
    %c0_5 = arith.constant 0 : index
    %8 = vector.load %arg3[%c0_3, %c0_4, %c0_5] : memref<3x16x128xbf16, #tpu.memory_space<vmem>>, vector<1x16x128xbf16>
    %9 = vector.shape_cast %8 : vector<1x16x128xbf16> to vector<16x128xbf16>
    %cst_6 = arith.constant dense<0.000000e+00> : vector<64x128xf32>
    %10 = tpu.matmul %7, %9, %cst_6 {dimension_numbers = #tpu.dot_dimension_numbers<[1], [0], [0], [1], [0, 0, 1, 1], [], []>} : vector<64x16xbf16>, vector<16x128xbf16>, vector<64x128xf32> -> vector<64x128xf32>
    %11 = vector.extract_strided_slice %6 {offsets = [0, 0], sizes = [1, 128], strides = [1, 1]} : vector<3x128xf32> to vector<1x128xf32>
    %12 = vector.broadcast %11 : vector<1x128xf32> to vector<64x128xf32>
    %13 = arith.subf %12, %10 : vector<64x128xf32>
    %14 = tpu.bitcast %13 : vector<64x128xf32> -> vector<64x128xi32>
    %c31_i32 = arith.constant 31 : i32
    %15 = vector.broadcast %c31_i32 : i32 to vector<64x128xi32>
    %16 = arith.shrsi %14, %15 : vector<64x128xi32>
    %c2147483647_i32 = arith.constant 2147483647 : i32
    %17 = vector.broadcast %c2147483647_i32 : i32 to vector<64x128xi32>
    %18 = arith.andi %16, %17 : vector<64x128xi32>
    %19 = arith.xori %14, %18 : vector<64x128xi32>
    %c-128_i32 = arith.constant -128 : i32
    %20 = vector.broadcast %c-128_i32 : i32 to vector<64x128xi32>
    %21 = arith.andi %19, %20 : vector<64x128xi32>
    %22 = arith.ori %21, %1 : vector<64x128xi32>
    %cst_7 = arith.constant dense<2147483647> : vector<64xi32>
    %23 = vector.multi_reduction <minsi>, %22, %cst_7 [1] : vector<64x128xi32> to vector<64xi32>
    %24 = vector.shape_cast %23 : vector<64xi32> to vector<64x1xi32>
    %c127_i32 = arith.constant 127 : i32
    %25 = vector.broadcast %c127_i32 : i32 to vector<64x1xi32>
    %26 = arith.andi %24, %25 : vector<64x1xi32>
    %27 = vector.broadcast %26 : vector<64x1xi32> to vector<64x128xi32>
    %28 = arith.cmpi eq, %1, %27 : vector<64x128xi32>
    %29 = arith.extui %28 : vector<64x128xi1> to vector<64x128xi32>
    %30 = arith.sitofp %29 : vector<64x128xi32> to vector<64x128xf32>
    %31 = arith.truncf %30 : vector<64x128xf32> to vector<64x128xbf16>
    %c0_8 = arith.constant 0 : index
    %c0_9 = arith.constant 0 : index
    %c0_10 = arith.constant 0 : index
    %32 = vector.load %arg2[%c0_8, %c0_9, %c0_10] : memref<3x128x16xbf16, #tpu.memory_space<vmem>>, vector<1x128x16xbf16>
    %33 = vector.shape_cast %32 : vector<1x128x16xbf16> to vector<128x16xbf16>
    %cst_11 = arith.constant dense<0.000000e+00> : vector<64x16xf32>
    %34 = tpu.matmul %31, %33, %cst_11 {dimension_numbers = #tpu.dot_dimension_numbers<[1], [0], [0], [1], [0, 0, 1, 1], [], []>} : vector<64x128xbf16>, vector<128x16xbf16>, vector<64x16xf32> -> vector<64x16xf32>
    %35 = arith.subf %0, %34 : vector<64x16xf32>
    %36 = arith.mulf %35, %35 : vector<64x16xf32>
    %cst_12 = arith.constant dense<0.000000e+00> : vector<64xf32>
    %37 = vector.multi_reduction <add>, %36, %cst_12 [1] : vector<64x16xf32> to vector<64xf32>
    %38 = vector.shape_cast %37 : vector<64xf32> to vector<64x1xf32>
    %cst_13 = arith.constant dense<0.000000e+00> : vector<1xf32>
    %39 = vector.multi_reduction <add>, %38, %cst_13 [0] : vector<64x1xf32> to vector<1xf32>
    %40 = vector.shape_cast %39 : vector<1xf32> to vector<1x1xf32>
    %c0_i32_14 = arith.constant 0 : i32
    %41 = vector.broadcast %c0_i32_14 : i32 to vector<3x128xi32>
    %42 = arith.cmpi eq, %3, %41 : vector<3x128xi32>
    %cst_15 = arith.constant 0.000000e+00 : f32
    %43 = vector.shape_cast %40 : vector<1x1xf32> to vector<1x1xf32>
    %44 = vector.broadcast %43 : vector<1x1xf32> to vector<3x128xf32>
    %45 = vector.broadcast %cst_15 : f32 to vector<3x128xf32>
    %46 = arith.select %42, %44, %45 : vector<3x128xi1>, vector<3x128xf32>
    %47 = arith.addf %5, %46 : vector<3x128xf32>
    %c0_i32_16 = arith.constant 0 : i32
    %48 = vector.broadcast %c0_i32_16 : i32 to vector<64x3xi32>
    %49 = arith.cmpi eq, %2, %48 : vector<64x3xi32>
    %50 = vector.shape_cast %26 : vector<64x1xi32> to vector<64x1xi32>
    %51 = vector.broadcast %50 : vector<64x1xi32> to vector<64x3xi32>
    %52 = arith.select %49, %51, %4 : vector<64x3xi1>, vector<64x3xi32>
    %53 = arith.truncf %35 : vector<64x16xf32> to vector<64x16xbf16>
    %c1 = arith.constant 1 : index
    %c0_17 = arith.constant 0 : index
    %c0_18 = arith.constant 0 : index
    %54 = vector.load %arg3[%c1, %c0_17, %c0_18] : memref<3x16x128xbf16, #tpu.memory_space<vmem>>, vector<1x16x128xbf16>
    %55 = vector.shape_cast %54 : vector<1x16x128xbf16> to vector<16x128xbf16>
    %cst_19 = arith.constant dense<0.000000e+00> : vector<64x128xf32>
    %56 = tpu.matmul %53, %55, %cst_19 {dimension_numbers = #tpu.dot_dimension_numbers<[1], [0], [0], [1], [0, 0, 1, 1], [], []>} : vector<64x16xbf16>, vector<16x128xbf16>, vector<64x128xf32> -> vector<64x128xf32>
    %57 = vector.extract_strided_slice %6 {offsets = [1, 0], sizes = [1, 128], strides = [1, 1]} : vector<3x128xf32> to vector<1x128xf32>
    %58 = vector.broadcast %57 : vector<1x128xf32> to vector<64x128xf32>
    %59 = arith.subf %58, %56 : vector<64x128xf32>
    %60 = tpu.bitcast %59 : vector<64x128xf32> -> vector<64x128xi32>
    %c31_i32_20 = arith.constant 31 : i32
    %61 = vector.broadcast %c31_i32_20 : i32 to vector<64x128xi32>
    %62 = arith.shrsi %60, %61 : vector<64x128xi32>
    %c2147483647_i32_21 = arith.constant 2147483647 : i32
    %63 = vector.broadcast %c2147483647_i32_21 : i32 to vector<64x128xi32>
    %64 = arith.andi %62, %63 : vector<64x128xi32>
    %65 = arith.xori %60, %64 : vector<64x128xi32>
    %c-128_i32_22 = arith.constant -128 : i32
    %66 = vector.broadcast %c-128_i32_22 : i32 to vector<64x128xi32>
    %67 = arith.andi %65, %66 : vector<64x128xi32>
    %68 = arith.ori %67, %1 : vector<64x128xi32>
    %cst_23 = arith.constant dense<2147483647> : vector<64xi32>
    %69 = vector.multi_reduction <minsi>, %68, %cst_23 [1] : vector<64x128xi32> to vector<64xi32>
    %70 = vector.shape_cast %69 : vector<64xi32> to vector<64x1xi32>
    %c127_i32_24 = arith.constant 127 : i32
    %71 = vector.broadcast %c127_i32_24 : i32 to vector<64x1xi32>
    %72 = arith.andi %70, %71 : vector<64x1xi32>
    %73 = vector.broadcast %72 : vector<64x1xi32> to vector<64x128xi32>
    %74 = arith.cmpi eq, %1, %73 : vector<64x128xi32>
    %75 = arith.extui %74 : vector<64x128xi1> to vector<64x128xi32>
    %76 = arith.sitofp %75 : vector<64x128xi32> to vector<64x128xf32>
    %77 = arith.truncf %76 : vector<64x128xf32> to vector<64x128xbf16>
    %c1_25 = arith.constant 1 : index
    %c0_26 = arith.constant 0 : index
    %c0_27 = arith.constant 0 : index
    %78 = vector.load %arg2[%c1_25, %c0_26, %c0_27] : memref<3x128x16xbf16, #tpu.memory_space<vmem>>, vector<1x128x16xbf16>
    %79 = vector.shape_cast %78 : vector<1x128x16xbf16> to vector<128x16xbf16>
    %cst_28 = arith.constant dense<0.000000e+00> : vector<64x16xf32>
    %80 = tpu.matmul %77, %79, %cst_28 {dimension_numbers = #tpu.dot_dimension_numbers<[1], [0], [0], [1], [0, 0, 1, 1], [], []>} : vector<64x128xbf16>, vector<128x16xbf16>, vector<64x16xf32> -> vector<64x16xf32>
    %81 = arith.subf %35, %80 : vector<64x16xf32>
    %82 = arith.mulf %81, %81 : vector<64x16xf32>
    %cst_29 = arith.constant dense<0.000000e+00> : vector<64xf32>
    %83 = vector.multi_reduction <add>, %82, %cst_29 [1] : vector<64x16xf32> to vector<64xf32>
    %84 = vector.shape_cast %83 : vector<64xf32> to vector<64x1xf32>
    %cst_30 = arith.constant dense<0.000000e+00> : vector<1xf32>
    %85 = vector.multi_reduction <add>, %84, %cst_30 [0] : vector<64x1xf32> to vector<1xf32>
    %86 = vector.shape_cast %85 : vector<1xf32> to vector<1x1xf32>
    %c1_i32 = arith.constant 1 : i32
    %87 = vector.broadcast %c1_i32 : i32 to vector<3x128xi32>
    %88 = arith.cmpi eq, %3, %87 : vector<3x128xi32>
    %cst_31 = arith.constant 0.000000e+00 : f32
    %89 = vector.shape_cast %86 : vector<1x1xf32> to vector<1x1xf32>
    %90 = vector.broadcast %89 : vector<1x1xf32> to vector<3x128xf32>
    %91 = vector.broadcast %cst_31 : f32 to vector<3x128xf32>
    %92 = arith.select %88, %90, %91 : vector<3x128xi1>, vector<3x128xf32>
    %93 = arith.addf %47, %92 : vector<3x128xf32>
    %c1_i32_32 = arith.constant 1 : i32
    %94 = vector.broadcast %c1_i32_32 : i32 to vector<64x3xi32>
    %95 = arith.cmpi eq, %2, %94 : vector<64x3xi32>
    %96 = vector.shape_cast %72 : vector<64x1xi32> to vector<64x1xi32>
    %97 = vector.broadcast %96 : vector<64x1xi32> to vector<64x3xi32>
    %98 = arith.select %95, %97, %52 : vector<64x3xi1>, vector<64x3xi32>
    %99 = arith.truncf %81 : vector<64x16xf32> to vector<64x16xbf16>
    %c2 = arith.constant 2 : index
    %c0_33 = arith.constant 0 : index
    %c0_34 = arith.constant 0 : index
    %100 = vector.load %arg3[%c2, %c0_33, %c0_34] : memref<3x16x128xbf16, #tpu.memory_space<vmem>>, vector<1x16x128xbf16>
    %101 = vector.shape_cast %100 : vector<1x16x128xbf16> to vector<16x128xbf16>
    %cst_35 = arith.constant dense<0.000000e+00> : vector<64x128xf32>
    %102 = tpu.matmul %99, %101, %cst_35 {dimension_numbers = #tpu.dot_dimension_numbers<[1], [0], [0], [1], [0, 0, 1, 1], [], []>} : vector<64x16xbf16>, vector<16x128xbf16>, vector<64x128xf32> -> vector<64x128xf32>
    %103 = vector.extract_strided_slice %6 {offsets = [2, 0], sizes = [1, 128], strides = [1, 1]} : vector<3x128xf32> to vector<1x128xf32>
    %104 = vector.broadcast %103 : vector<1x128xf32> to vector<64x128xf32>
    %105 = arith.subf %104, %102 : vector<64x128xf32>
    %106 = tpu.bitcast %105 : vector<64x128xf32> -> vector<64x128xi32>
    %c31_i32_36 = arith.constant 31 : i32
    %107 = vector.broadcast %c31_i32_36 : i32 to vector<64x128xi32>
    %108 = arith.shrsi %106, %107 : vector<64x128xi32>
    %c2147483647_i32_37 = arith.constant 2147483647 : i32
    %109 = vector.broadcast %c2147483647_i32_37 : i32 to vector<64x128xi32>
    %110 = arith.andi %108, %109 : vector<64x128xi32>
    %111 = arith.xori %106, %110 : vector<64x128xi32>
    %c-128_i32_38 = arith.constant -128 : i32
    %112 = vector.broadcast %c-128_i32_38 : i32 to vector<64x128xi32>
    %113 = arith.andi %111, %112 : vector<64x128xi32>
    %114 = arith.ori %113, %1 : vector<64x128xi32>
    %cst_39 = arith.constant dense<2147483647> : vector<64xi32>
    %115 = vector.multi_reduction <minsi>, %114, %cst_39 [1] : vector<64x128xi32> to vector<64xi32>
    %116 = vector.shape_cast %115 : vector<64xi32> to vector<64x1xi32>
    %c127_i32_40 = arith.constant 127 : i32
    %117 = vector.broadcast %c127_i32_40 : i32 to vector<64x1xi32>
    %118 = arith.andi %116, %117 : vector<64x1xi32>
    %119 = vector.broadcast %118 : vector<64x1xi32> to vector<64x128xi32>
    %120 = arith.cmpi eq, %1, %119 : vector<64x128xi32>
    %121 = arith.extui %120 : vector<64x128xi1> to vector<64x128xi32>
    %122 = arith.sitofp %121 : vector<64x128xi32> to vector<64x128xf32>
    %123 = arith.truncf %122 : vector<64x128xf32> to vector<64x128xbf16>
    %c2_41 = arith.constant 2 : index
    %c0_42 = arith.constant 0 : index
    %c0_43 = arith.constant 0 : index
    %124 = vector.load %arg2[%c2_41, %c0_42, %c0_43] : memref<3x128x16xbf16, #tpu.memory_space<vmem>>, vector<1x128x16xbf16>
    %125 = vector.shape_cast %124 : vector<1x128x16xbf16> to vector<128x16xbf16>
    %cst_44 = arith.constant dense<0.000000e+00> : vector<64x16xf32>
    %126 = tpu.matmul %123, %125, %cst_44 {dimension_numbers = #tpu.dot_dimension_numbers<[1], [0], [0], [1], [0, 0, 1, 1], [], []>} : vector<64x128xbf16>, vector<128x16xbf16>, vector<64x16xf32> -> vector<64x16xf32>
    %127 = arith.subf %81, %126 : vector<64x16xf32>
    %128 = arith.mulf %127, %127 : vector<64x16xf32>
    %cst_45 = arith.constant dense<0.000000e+00> : vector<64xf32>
    %129 = vector.multi_reduction <add>, %128, %cst_45 [1] : vector<64x16xf32> to vector<64xf32>
    %130 = vector.shape_cast %129 : vector<64xf32> to vector<64x1xf32>
    %cst_46 = arith.constant dense<0.000000e+00> : vector<1xf32>
    %131 = vector.multi_reduction <add>, %130, %cst_46 [0] : vector<64x1xf32> to vector<1xf32>
    %132 = vector.shape_cast %131 : vector<1xf32> to vector<1x1xf32>
    %c2_i32 = arith.constant 2 : i32
    %133 = vector.broadcast %c2_i32 : i32 to vector<3x128xi32>
    %134 = arith.cmpi eq, %3, %133 : vector<3x128xi32>
    %cst_47 = arith.constant 0.000000e+00 : f32
    %135 = vector.shape_cast %132 : vector<1x1xf32> to vector<1x1xf32>
    %136 = vector.broadcast %135 : vector<1x1xf32> to vector<3x128xf32>
    %137 = vector.broadcast %cst_47 : f32 to vector<3x128xf32>
    %138 = arith.select %134, %136, %137 : vector<3x128xi1>, vector<3x128xf32>
    %139 = arith.addf %93, %138 : vector<3x128xf32>
    %c2_i32_48 = arith.constant 2 : i32
    %140 = vector.broadcast %c2_i32_48 : i32 to vector<64x3xi32>
    %141 = arith.cmpi eq, %2, %140 : vector<64x3xi32>
    %142 = vector.shape_cast %118 : vector<64x1xi32> to vector<64x1xi32>
    %143 = vector.broadcast %142 : vector<64x1xi32> to vector<64x3xi32>
    %144 = arith.select %141, %143, %98 : vector<64x3xi1>, vector<64x3xi32>
    %145 = arith.subf %0, %127 : vector<64x16xf32>
    %c0_49 = arith.constant 0 : index
    %c0_50 = arith.constant 0 : index
    %146 = vector.load %arg5[%c0_49, %c0_50] : memref<64x16xf32, #tpu.memory_space<vmem>>, vector<64x16xf32>
    tpu.vector_store %arg5[%c0_49, %c0_50], %145 {strides = array<i32>} : memref<64x16xf32, #tpu.memory_space<vmem>>, vector<64x16xf32>,
    %c0_51 = arith.constant 0 : index
    %c0_52 = arith.constant 0 : index
    %147 = vector.load %arg6[%c0_51, %c0_52] : memref<64x3xi32, #tpu.memory_space<vmem>>, vector<64x3xi32>
    tpu.vector_store %arg6[%c0_51, %c0_52], %144 {strides = array<i32>} : memref<64x3xi32, #tpu.memory_space<vmem>>, vector<64x3xi32>,
    %c0_53 = arith.constant 0 : index
    %c0_54 = arith.constant 0 : index
    %148 = vector.load %arg7[%c0_53, %c0_54] : memref<3x128xf32, #tpu.memory_space<vmem>>, vector<3x128xf32>
    tpu.vector_store %arg7[%c0_53, %c0_54], %139 {strides = array<i32>} : memref<3x128xf32, #tpu.memory_space<vmem>>, vector<3x128xf32>,
    return
  }
  func.func @transform_0(%arg0: i32) -> (i32, i32) {
    %c0_i32 = arith.constant 0 : i32
    %c0_i32_0 = arith.constant 0 : i32
    return %arg0, %c0_i32 : i32, i32
  }
  func.func @transform_1(%arg0: i32) -> (i32, i32, i32) {
    %c0_i32 = arith.constant 0 : i32
    %c0_i32_0 = arith.constant 0 : i32
    %c0_i32_1 = arith.constant 0 : i32
    %c0_i32_2 = arith.constant 0 : i32
    return %c0_i32, %c0_i32_0, %c0_i32_1 : i32, i32, i32
  }
  func.func @transform_2(%arg0: i32) -> (i32, i32, i32) {
    %c0_i32 = arith.constant 0 : i32
    %c0_i32_0 = arith.constant 0 : i32
    %c0_i32_1 = arith.constant 0 : i32
    %c0_i32_2 = arith.constant 0 : i32
    return %c0_i32, %c0_i32_0, %c0_i32_1 : i32, i32, i32
  }
  func.func @transform_3(%arg0: i32) -> (i32, i32) {
    %c0_i32 = arith.constant 0 : i32
    %c0_i32_0 = arith.constant 0 : i32
    %c0_i32_1 = arith.constant 0 : i32
    return %c0_i32, %c0_i32_0 : i32, i32
  }
  func.func @transform_4(%arg0: i32) -> (i32, i32) {
    %c0_i32 = arith.constant 0 : i32
    %c0_i32_0 = arith.constant 0 : i32
    return %arg0, %c0_i32 : i32, i32
  }
  func.func @transform_5(%arg0: i32) -> (i32, i32) {
    %c0_i32 = arith.constant 0 : i32
    %c0_i32_0 = arith.constant 0 : i32
    return %arg0, %c0_i32 : i32, i32
  }
  func.func @transform_6(%arg0: i32) -> (i32, i32) {
    %c0_i32 = arith.constant 0 : i32
    %c0_i32_0 = arith.constant 0 : i32
    return %c0_i32, %arg0 : i32, i32
  }
}

</mosaic_0001>

<llo_original>
// kernel: tpu_custom_call.1
$region0: #{tpu_custom_call.1}
  #allocation0 [shape = 'u32[]', space=smem, size = 0x4, offset = 0x4, fixed_abs, tag = 'smem constant byte address 0x4 - core index']
  #allocation1 [shape = 'u32[144,128]{1,0:T(1,128)}', space=vmem, size = 0x12000, scoped, tag = 'internal scratch']
  %s0 = inlined_call_operand.vmem [shape: f32[128,16], index: 0, kind: input, shape index: {}]
  %s1 = inlined_call_operand.vmem [shape: bf16[3,128,16], index: 1, kind: input, shape index: {}]
  %s2 = inlined_call_operand.vmem [shape: bf16[3,16,128], index: 2, kind: input, shape index: {}]
  %s3 = inlined_call_operand.vmem [shape: f32[3,128], index: 3, kind: input, shape index: {}]
  %s4 = inlined_call_operand.vmem [shape: f32[128,16], index: 4, kind: output, shape index: {0}]
  %s5 = inlined_call_operand.vmem [shape: s32[128,3], index: 5, kind: output, shape index: {1}]
  %s6 = inlined_call_operand.hbm [shape: f32[3,256], index: 6, kind: output, shape index: {2}]
  %7 = xla_tuple %s4, %s5, %s6
  %s8 = sld [smem:[#allocation0]]
  $region65: #{tpu_custom_call.1} parent=0
    _
  %s10 = ssub.s32 1, %s8
  %s11 = scalar_select 0, %s10, %s8
  $region1: #{tpu_custom_call.1} parent=0
    #allocation2 [shape = 'u8[4096]{0}', space=vmem, size = 0x1000, scoped, tag = 'output window, operand 2']
    #allocation3 [shape = 's32[2]{0}', space=sflag, size = 0x8, scoped, tag = 'scoped memory for tpu_custom_call.1']
    %12 = vsyncpa [#allocation3], 0
    %s13 = scalar_lea.sflag [#allocation3], 1
    %14 = vsyncpa %s13, 0
    loop: start=0, step=1, limit=4
    $region2: #{tpu_custom_call.1} parent=1 // loop_pre_header
      _
    $region3: #{tpu_custom_call.1} parent=1 // loop_header
      %s16 = sphi 0, %s20
      %p17 = scmp.ge.s32.totalorder %s16, 4
      %s26 = sphi 0, %s28
      %s29 = sphi 0, %s26
      %s30 = sphi 0, %s29
      %s46 = sphi 0, %s30
      %s50 = sphi 0, %s50
      %s52 = sphi 0, %s50
      %s53 = sphi 0, %s52
      %s67 = sphi 0, %s53
      %s71 = sphi 0, %s71
      %s73 = sphi 0, %s71
      %s74 = sphi 0, %s73
      %s88 = sphi 0, %s74
      %s92 = sphi 0, %s92
      %s94 = sphi 0, %s92
      %s95 = sphi 0, %s94
      %s109 = sphi 0, %s95
      %s115 = sphi 0, %s117
      %s118 = sphi 0, %s115
      %s119 = sphi 0, %s118
      %s135 = sphi 0, %s119
      %s141 = sphi 0, %s143
      %s144 = sphi 0, %s141
      %s145 = sphi 0, %s144
      %s161 = sphi 0, %s145
      %s167 = sphi 0, %s169
      %s170 = sphi 0, %s167
      %s171 = sphi 0, %s170
      %s187 = sphi 0, %s171
    $region4: #{tpu_custom_call.1} parent=1 // loop_header_branch
      %19 = sbr.rel (%p17) target = $region8
    $region5: #{tpu_custom_call.1} parent=1 // loop_body
      %s21 = ssub.s32 %s16, 1
      %s22 = ssub.s32 %s16, 2
      %s23 = sadd.s32 %s16, 1
      %s24 = ssub.s32 %s16, %s23
      %p25 = scmp.eq.s32.totalorder %s24, 0
      %s27 = sadd.s32 %s26, 1
      %s28 = scalar_select %p25, %s26, %s27
      %p31 = pneg %p25
      %p32 = scmp.eq.s32.totalorder %s16, 1
      %p33 = por %p31, %p32
      %p34 = scmp.ne.s32.totalorder %s26, %s29
      %p35 = scmp.eq.s32.totalorder %s16, 0
      %p36 = por %p34, %p35
      %p37 = scmp.ne.s32.totalorder %s26, %s29
      %p38 = scmp.eq.s32.totalorder %s21, 1
      %p39 = por %p37, %p38
      %p40 = scmp.ne.s32.totalorder %s29, %s30
      %p41 = scmp.eq.s32.totalorder %s21, 0
      %p42 = por %p40, %p41
      %p43 = scmp.ne.s32.totalorder %s29, %s30
      %p44 = scmp.eq.s32.totalorder %s22, 1
      %p45 = por %p43, %p44
      %p47 = scmp.ne.s32.totalorder %s30, %s46
      %p48 = scmp.eq.s32.totalorder %s22, 0
      %p49 = por %p47, %p48
      %s51 = sadd.s32 %s50, 1
      %p54 = scmp.eq.s32.totalorder %s16, 1
      %p55 = scmp.ne.s32.totalorder %s50, %s52
      %p56 = scmp.eq.s32.totalorder %s16, 0
      %p57 = por %p55, %p56
      %p58 = scmp.ne.s32.totalorder %s50, %s52
      %p59 = scmp.eq.s32.totalorder %s21, 1
      %p60 = por %p58, %p59
      %p61 = scmp.ne.s32.totalorder %s52, %s53
      %p62 = scmp.eq.s32.totalorder %s21, 0
      %p63 = por %p61, %p62
      %p64 = scmp.ne.s32.totalorder %s52, %s53
      %p65 = scmp.eq.s32.totalorder %s22, 1
      %p66 = por %p64, %p65
      %p68 = scmp.ne.s32.totalorder %s53, %s67
      %p69 = scmp.eq.s32.totalorder %s22, 0
      %p70 = por %p68, %p69
      %s72 = sadd.s32 %s71, 1
      %p75 = scmp.eq.s32.totalorder %s16, 1
      %p76 = scmp.ne.s32.totalorder %s71, %s73
      %p77 = scmp.eq.s32.totalorder %s16, 0
      %p78 = por %p76, %p77
      %p79 = scmp.ne.s32.totalorder %s71, %s73
      %p80 = scmp.eq.s32.totalorder %s21, 1
      %p81 = por %p79, %p80
      %p82 = scmp.ne.s32.totalorder %s73, %s74
      %p83 = scmp.eq.s32.totalorder %s21, 0
      %p84 = por %p82, %p83
      %p85 = scmp.ne.s32.totalorder %s73, %s74
      %p86 = scmp.eq.s32.totalorder %s22, 1
      %p87 = por %p85, %p86
      %p89 = scmp.ne.s32.totalorder %s74, %s88
      %p90 = scmp.eq.s32.totalorder %s22, 0
      %p91 = por %p89, %p90
      %s93 = sadd.s32 %s92, 1
      %p96 = scmp.eq.s32.totalorder %s16, 1
      %p97 = scmp.ne.s32.totalorder %s92, %s94
      %p98 = scmp.eq.s32.totalorder %s16, 0
      %p99 = por %p97, %p98
      %p100 = scmp.ne.s32.totalorder %s92, %s94
      %p101 = scmp.eq.s32.totalorder %s21, 1
      %p102 = por %p100, %p101
      %p103 = scmp.ne.s32.totalorder %s94, %s95
      %p104 = scmp.eq.s32.totalorder %s21, 0
      %p105 = por %p103, %p104
      %p106 = scmp.ne.s32.totalorder %s94, %s95
      %p107 = scmp.eq.s32.totalorder %s22, 1
      %p108 = por %p106, %p107
      %p110 = scmp.ne.s32.totalorder %s95, %s109
      %p111 = scmp.eq.s32.totalorder %s22, 0
      %p112 = por %p110, %p111
      %s113 = ssub.s32 %s16, %s23
      %p114 = scmp.eq.s32.totalorder %s113, 0
      %s116 = sadd.s32 %s115, 1
      %s117 = scalar_select %p114, %s115, %s116
      %p120 = pneg %p114
      %p121 = scmp.eq.s32.totalorder %s16, 1
      %p122 = por %p120, %p121
      %p123 = scmp.ne.s32.totalorder %s115, %s118
      %p124 = scmp.eq.s32.totalorder %s16, 0
      %p125 = por %p123, %p124
      %p126 = scmp.ne.s32.totalorder %s115, %s118
      %p127 = scmp.eq.s32.totalorder %s21, 1
      %p128 = por %p126, %p127
      %p129 = scmp.ne.s32.totalorder %s118, %s119
      %p130 = scmp.eq.s32.totalorder %s21, 0
      %p131 = por %p129, %p130
      %p132 = scmp.ne.s32.totalorder %s118, %s119
      %p133 = scmp.eq.s32.totalorder %s22, 1
      %p134 = por %p132, %p133
      %p136 = scmp.ne.s32.totalorder %s119, %s135
      %p137 = scmp.eq.s32.totalorder %s22, 0
      %p138 = por %p136, %p137
      %s139 = ssub.s32 %s16, %s23
      %p140 = scmp.eq.s32.totalorder %s139, 0
      %s142 = sadd.s32 %s141, 1
      %s143 = scalar_select %p140, %s141, %s142
      %p146 = pneg %p140
      %p147 = scmp.eq.s32.totalorder %s16, 1
      %p148 = por %p146, %p147
      %p149 = scmp.ne.s32.totalorder %s141, %s144
      %p150 = scmp.eq.s32.totalorder %s16, 0
      %p151 = por %p149, %p150
      %p152 = scmp.ne.s32.totalorder %s141, %s144
      %p153 = scmp.eq.s32.totalorder %s21, 1
      %p154 = por %p152, %p153
      %p155 = scmp.ne.s32.totalorder %s144, %s145
      %p156 = scmp.eq.s32.totalorder %s21, 0
      %p157 = por %p155, %p156
      %p158 = scmp.ne.s32.totalorder %s144, %s145
      %p159 = scmp.eq.s32.totalorder %s22, 1
      %p160 = por %p158, %p159
      %p162 = scmp.ne.s32.totalorder %s145, %s161
      %p163 = scmp.eq.s32.totalorder %s22, 0
      %p164 = por %p162, %p163
      %s165 = ssub.s32 %s16, %s23
      %p166 = scmp.eq.s32.totalorder %s165, 0
      %s168 = sadd.s32 %s167, 1
      %s169 = scalar_select %p166, %s167, %s168
      %p172 = pneg %p166
      %p173 = scmp.eq.s32.totalorder %s16, 1
      %p174 = por %p172, %p173
      %p175 = scmp.ne.s32.totalorder %s167, %s170
      %p176 = scmp.eq.s32.totalorder %s16, 0
      %p177 = por %p175, %p176
      %p178 = scmp.ne.s32.totalorder %s167, %s170
      %p179 = scmp.eq.s32.totalorder %s21, 1
      %p180 = por %p178, %p179
      %p181 = scmp.ne.s32.totalorder %s170, %s171
      %p182 = scmp.eq.s32.totalorder %s21, 0
      %p183 = por %p181, %p182
      %p184 = scmp.ne.s32.totalorder %s170, %s171
      %p185 = scmp.eq.s32.totalorder %s22, 1
      %p186 = por %p184, %p185
      %p188 = scmp.ne.s32.totalorder %s171, %s187
      %p189 = scmp.eq.s32.totalorder %s22, 0
      %p190 = por %p188, %p189
      %p191 = scmp.le.s32.totalorder 1, %s16
      %p192 = scmp.lt.s32.totalorder %s16, 3
      %p193 = pnand %p191, %p192
      %p194 = pneg %p193
      // Predicated region
      $region9: #{tpu_custom_call.1} parent=5 // pred_check
        _
      $region10: #{tpu_custom_call.1} parent=5 // pred_check_branch
        %196 = sbr.rel (%p193) target = $region12
      $region11: #{tpu_custom_call.1} parent=5 // pred_region
        %s197 = ssub.s32 %s16, 1
        // Predicated region
        $region13: #{tpu_custom_call.1} parent=11 // pred_check
          %p198 = pneg %p63
        $region14: #{tpu_custom_call.1} parent=11 // pred_check_branch
          %200 = sbr.rel (%p198) target = $region16
        $region15: #{tpu_custom_call.1} parent=11 // pred_region
          _
        $region16: #{tpu_custom_call.1} parent=11 // pred_fallthru
          _
        // Predicated region
        $region17: #{tpu_custom_call.1} parent=11 // pred_check
          %p201 = pneg %p84
        $region18: #{tpu_custom_call.1} parent=11 // pred_check_branch
          %203 = sbr.rel (%p201) target = $region20
        $region19: #{tpu_custom_call.1} parent=11 // pred_region
          _
        $region20: #{tpu_custom_call.1} parent=11 // pred_fallthru
          _
        // Predicated region
        $region21: #{tpu_custom_call.1} parent=11 // pred_check
          %p204 = pneg %p105
        $region22: #{tpu_custom_call.1} parent=11 // pred_check_branch
          %206 = sbr.rel (%p204) target = $region24
        $region23: #{tpu_custom_call.1} parent=11 // pred_region
          _
        $region24: #{tpu_custom_call.1} parent=11 // pred_fallthru
          _
      $region12: #{tpu_custom_call.1} parent=5 // pred_fallthru
        _
      %p207 = scmp.lt.s32.totalorder %s16, 2
      // Predicated region
      $region25: #{tpu_custom_call.1} parent=5 // pred_check
        %p208 = pneg %p207
      $region26: #{tpu_custom_call.1} parent=5 // pred_check_branch
        %210 = sbr.rel (%p208) target = $region28
      $region27: #{tpu_custom_call.1} parent=5 // pred_region
        // Predicated region
        $region29: #{tpu_custom_call.1} parent=27 // pred_check
          %p211 = pneg %p36
        $region30: #{tpu_custom_call.1} parent=27 // pred_check_branch
          %213 = sbr.rel (%p211) target = $region32
        $region31: #{tpu_custom_call.1} parent=27 // pred_region
          %s214 = smul.u32 8, %s16
          %p215 = scmp.lt.s32.totalorder %s214, 15
          %s216 = scalar_select %p215, %s214, 15
          %s217 = smul.addr %s216, 8
          %s218 = scalar_lea.vmem %s0, %s217
          %s219 = smul.u32 8, %s16
        $region32: #{tpu_custom_call.1} parent=27 // pred_fallthru
          _
      $region28: #{tpu_custom_call.1} parent=5 // pred_fallthru
        _
      %p220 = scmp.le.s32.totalorder 1, %s16
      %p221 = scmp.lt.s32.totalorder %s16, 3
      %p222 = pnand %p220, %p221
      %p223 = pneg %p222
      // Predicated region
      $region33: #{tpu_custom_call.1} parent=5 // pred_check
        _
      $region34: #{tpu_custom_call.1} parent=5 // pred_check_branch
        %225 = sbr.rel (%p222) target = $region36
      $region35: #{tpu_custom_call.1} parent=5 // pred_region
        %s226 = ssub.s32 %s16, 1
        %s227 = smul.u32 8, %s21
        %p228 = scmp.lt.s32.totalorder %s227, 15
        %s229 = scalar_select %p228, %s227, 15
        %s230 = smul.addr %s229, 8
        %s231 = scalar_lea.vmem %s0, %s230
        %p232 = pneg %p42
        %p233 = pneg %p39
        %p234 = pneg %p63
        %p235 = pneg %p60
        %p236 = pneg %p84
        %p237 = pneg %p81
        %p238 = pneg %p105
        %p239 = pneg %p102
        %p240 = pneg %p131
        %p241 = pneg %p128
        %s242 = smul.u32 8, %s21
        %p243 = scmp.lt.s32.totalorder %s242, 15
        %s244 = scalar_select %p243, %s242, 15
        %s245 = smul.addr %s244, 8
        %s246 = scalar_lea.vmem %s4, %s245
        %p247 = pneg %p157
        %p248 = pneg %p154
        %s249 = smul.u32 8, %s21
        %p250 = scmp.lt.s32.totalorder %s249, 15
        %s251 = scalar_select %p250, %s249, 15
        %s252 = smul.addr %s251, 8
        %s253 = scalar_lea.vmem %s5, %s252
        %p254 = pneg %p183
        %p255 = pneg %p180
        %s256 = sand.u32 %s170, 1
        %s257 = scalar_lea.sflag [#allocation3], %s256
        %s258 = sand.u32 %s170, 1
        %s259 = smul.addr %s258, 4
        %s260 = scalar_lea.vmem [#allocation2], %s259
        %s261 = smul.u32 8, %s21
        %p262 = scmp.lt.s32.totalorder %s261, 15
        %s263 = scalar_select %p262, %s261, 15
        %s264 = smul.addr %s263, 8
        %s265 = scalar_lea.vmem %s0, %s264
        %s266 = smul.u32 8, %s21
        %s267 = smul.u32 8, %s21
        %p268 = scmp.lt.s32.totalorder %s267, 15
        %s269 = scalar_select %p268, %s267, 15
        %s270 = smul.addr %s269, 8
        %s271 = scalar_lea.vmem %s4, %s270
        %s272 = smul.u32 8, %s21
        %s273 = smul.u32 8, %s21
        %p274 = scmp.lt.s32.totalorder %s273, 15
        %s275 = scalar_select %p274, %s273, 15
        %s276 = smul.addr %s275, 8
        %s277 = scalar_lea.vmem %s5, %s276
        %s278 = smul.u32 8, %s21
        %v280 = vld [vmem:[%s265] sm:$0xff]
        %v281 = vld [vmem:[%s265 + $0x8] sm:$0xff]
        %v282 = vld [vmem:[%s265 + $0x10] sm:$0xff]
        %v283 = vld [vmem:[%s265 + $0x18] sm:$0xff]
        %v284 = vld [vmem:[%s265 + $0x20] sm:$0xff]
        %v285 = vld [vmem:[%s265 + $0x28] sm:$0xff]
        %v286 = vld [vmem:[%s265 + $0x30] sm:$0xff]
        %v287 = vld [vmem:[%s265 + $0x38] sm:$0xff]
        %v288 = vlaneseq
        %v289 = vand.u32 %v288, 127
        %v290 = vlaneseq
        %v291 = vshrl.u32 %v290, 7
        %v292 = vld [vmem:[%s3] sm:$0x7]
        %v293 = vpack.c.bf16 %v281, %v280
        %v294 = vpack.c.bf16 %v283, %v282
        %v295 = vpack.c.bf16 %v285, %v284
        %v296 = vpack.c.bf16 %v287, %v286
        %v297 = vld [vmem:[%s2] sm:$0xf]
        %v298 = vld [vmem:[%s2 + $0x4] sm:$0xf]
        %v301 = vunpack.c.l.b16 %v297
        %v302 = vunpack.c.l.b16 %v298
        %v303 = vpack.c.b16 %v302, %v301
        %vm305 = vcmask 130048
        %v307 = vsel %vm305, %v293, 0
        %v310 = vsel %vm305, %v294, 0
        %v313 = vsel %vm305, %v295, 0
        %v316 = vsel %vm305, %v296, 0
        %318 = vmatprep.subr.bf16.mxu0 0
        %319 = vmatpush1.bf16.msra.mxu0 %v303
        %320 = vmatprep.subr.bf16.mxu0 0
        %321 = vmatpush1.bf16.msra.mxu0 0
        %322 = vmatprep.subr.bf16.mxu0 0
        %323 = vmatpush1.bf16.msra.mxu0 0
        %324 = vmatprep.subr.bf16.mxu0 0
        %325 = vmatpush1.bf16.msra.mxu0 0
        %326 = vmatprep.subr.bf16.mxu0 0
        %327 = vmatpush1.bf16.msra.mxu0 0
        %328 = vmatprep.subr.bf16.mxu0 0
        %329 = vmatpush1.bf16.msra.mxu0 0
        %330 = vmatprep.subr.bf16.mxu0 0
        %331 = vmatpush1.bf16.msra.mxu0 0
        %332 = vmatprep.subr.bf16.mxu0 0
        %333 = vmatpush1.bf16.msra.mxu0 0
        %334 = vmatprep.subr.bf16.mxu0 0
        %335 = vmatpush1.bf16.msra.mxu0 0
        %336 = vmatprep.subr.bf16.mxu0 0
        %337 = vmatpush1.bf16.msra.mxu0 0
        %338 = vmatprep.subr.bf16.mxu0 0
        %339 = vmatpush1.bf16.msra.mxu0 0
        %340 = vmatprep.subr.bf16.mxu0 0
        %341 = vmatpush1.bf16.msra.mxu0 0
        %342 = vmatprep.subr.bf16.mxu0 0
        %343 = vmatpush1.bf16.msra.mxu0 0
        %344 = vmatprep.subr.bf16.mxu0 0
        %345 = vmatpush1.bf16.msra.mxu0 0
        %346 = vmatprep.subr.bf16.mxu0 0
        %347 = vmatpush1.bf16.msra.mxu0 0
        %348 = vmatprep.subr.bf16.mxu0 0
        %349 = vmatpush1.bf16.msra.mxu0 0
        %350 = vmatprep.mubr.bf16.mxu0 0
        %351 = vmatmul.mubr.bf16.gmra.mrb[0].mxu0 %v307
        %v352 = vpop.f32.mrb[0].mxu0
        %v353 = vadd.f32 0.0, %v352
        %v354 = vpop.f32.mrb[0].mxu0
        %v355 = vpop.f32.mrb[0].mxu0
        %v356 = vadd.f32 0.0, %v355
        %v357 = vpop.f32.mrb[0].mxu0
        %358 = vmatprep.mubr.bf16.mxu0 0
        %359 = vmatmul.mubr.bf16.gmra.mrb[0].mxu0 %v310
        %v360 = vpop.f32.mrb[0].mxu0
        %v361 = vadd.f32 0.0, %v360
        %v362 = vpop.f32.mrb[0].mxu0
        %v363 = vpop.f32.mrb[0].mxu0
        %v364 = vadd.f32 0.0, %v363
        %v365 = vpop.f32.mrb[0].mxu0
        %366 = vmatprep.mubr.bf16.mxu0 0
        %367 = vmatmul.mubr.bf16.gmra.mrb[0].mxu0 %v313
        %v368 = vpop.f32.mrb[0].mxu0
        %v369 = vadd.f32 0.0, %v368
        %v370 = vpop.f32.mrb[0].mxu0
        %v371 = vpop.f32.mrb[0].mxu0
        %v372 = vadd.f32 0.0, %v371
        %v373 = vpop.f32.mrb[0].mxu0
        %374 = vmatprep.mubr.bf16.mxu0 0
        %375 = vmatmul.mubr.bf16.gmra.mrb[0].mxu0 %v316
        %v376 = vpop.f32.mrb[0].mxu0
        %v377 = vadd.f32 0.0, %v376
        %v378 = vpop.f32.mrb[0].mxu0
        %v379 = vpop.f32.mrb[0].mxu0
        %v380 = vadd.f32 0.0, %v379
        %v381 = vpop.f32.mrb[0].mxu0
        %382 = vdwg.mxu0
        %v383 = vlaneseq
        %v384 = vshrl.u32 %v383, 7
        %v385 = vsub.s32 0, %v384
        %v386 = vrot.slane %v292, %v385
        %v387 = vsub.f32 %v386, %v353
        %v388 = vsub.f32 %v386, %v356
        %v389 = vsub.f32 %v386, %v361
        %v390 = vsub.f32 %v386, %v364
        %v391 = vsub.f32 %v386, %v369
        %v392 = vsub.f32 %v386, %v372
        %v393 = vsub.f32 %v386, %v377
        %v394 = vsub.f32 %v386, %v380
        %v403 = vshra.s32 %v387, 31
        %v404 = vshra.s32 %v388, 31
        %v405 = vshra.s32 %v389, 31
        %v406 = vshra.s32 %v390, 31
        %v407 = vshra.s32 %v391, 31
        %v408 = vshra.s32 %v392, 31
        %v409 = vshra.s32 %v393, 31
        %v410 = vshra.s32 %v394, 31
        %v411 = vand.u32 %v403, 2147483647
        %v412 = vand.u32 %v404, 2147483647
        %v413 = vand.u32 %v405, 2147483647
        %v414 = vand.u32 %v406, 2147483647
        %v415 = vand.u32 %v407, 2147483647
        %v416 = vand.u32 %v408, 2147483647
        %v417 = vand.u32 %v409, 2147483647
        %v418 = vand.u32 %v410, 2147483647
        %v419 = vxor.u32 %v387, %v411
        %v420 = vxor.u32 %v388, %v412
        %v421 = vxor.u32 %v389, %v413
        %v422 = vxor.u32 %v390, %v414
        %v423 = vxor.u32 %v391, %v415
        %v424 = vxor.u32 %v392, %v416
        %v425 = vxor.u32 %v393, %v417
        %v426 = vxor.u32 %v394, %v418
        %v427 = vand.u32 %v419, 4294967168
        %v428 = vand.u32 %v420, 4294967168
        %v429 = vand.u32 %v421, 4294967168
        %v430 = vand.u32 %v422, 4294967168
        %v431 = vand.u32 %v423, 4294967168
        %v432 = vand.u32 %v424, 4294967168
        %v433 = vand.u32 %v425, 4294967168
        %v434 = vand.u32 %v426, 4294967168
        %v435 = vor.u32 %v427, %v289
        %v436 = vor.u32 %v428, %v289
        %v437 = vor.u32 %v429, %v289
        %v438 = vor.u32 %v430, %v289
        %v439 = vor.u32 %v431, %v289
        %v440 = vor.u32 %v432, %v289
        %v441 = vor.u32 %v433, %v289
        %v442 = vor.u32 %v434, %v289
        %v443 = vand.u32 %v435, 65535
        %v444 = vshra.s32 %v435, 16
        %v445 = vcvt.s32.f32 %v443
        %v446 = vcvt.s32.f32 %v444
        %447 = vmin.xlane.f32.xlu0 %v446
        %v448 = vpop.xlane.xlu0 %447
        %vm449 = vcmp.eq.f32.partialorder %v446, %v448
        %v450 = vsel %vm449, %v445, inf
        %451 = vmin.xlane.f32.xlu0 %v450
        %v452 = vpop.xlane.xlu0 %451
        %v453 = vcvt.f32.s32 %v452
        %v454 = vcvt.f32.s32 %v448
        %v455 = vshll.u32 %v454, 16
        %v456 = vadd.s32 %v455, %v453
        %v457 = vand.u32 %v436, 65535
        %v458 = vshra.s32 %v436, 16
        %v459 = vcvt.s32.f32 %v457
        %v460 = vcvt.s32.f32 %v458
        %461 = vmin.xlane.f32.xlu0 %v460
        %v462 = vpop.xlane.xlu0 %461
        %vm463 = vcmp.eq.f32.partialorder %v460, %v462
        %v464 = vsel %vm463, %v459, inf
        %465 = vmin.xlane.f32.xlu0 %v464
        %v466 = vpop.xlane.xlu0 %465
        %v467 = vcvt.f32.s32 %v466
        %v468 = vcvt.f32.s32 %v462
        %v469 = vshll.u32 %v468, 16
        %v470 = vadd.s32 %v469, %v467
        %v471 = vand.u32 %v437, 65535
        %v472 = vshra.s32 %v437, 16
        %v473 = vcvt.s32.f32 %v471
        %v474 = vcvt.s32.f32 %v472
        %475 = vmin.xlane.f32.xlu0 %v474
        %v476 = vpop.xlane.xlu0 %475
        %vm477 = vcmp.eq.f32.partialorder %v474, %v476
        %v478 = vsel %vm477, %v473, inf
        %479 = vmin.xlane.f32.xlu0 %v478
        %v480 = vpop.xlane.xlu0 %479
        %v481 = vcvt.f32.s32 %v480
        %v482 = vcvt.f32.s32 %v476
        %v483 = vshll.u32 %v482, 16
        %v484 = vadd.s32 %v483, %v481
        %v485 = vand.u32 %v438, 65535
        %v486 = vshra.s32 %v438, 16
        %v487 = vcvt.s32.f32 %v485
        %v488 = vcvt.s32.f32 %v486
        %489 = vmin.xlane.f32.xlu0 %v488
        %v490 = vpop.xlane.xlu0 %489
        %vm491 = vcmp.eq.f32.partialorder %v488, %v490
        %v492 = vsel %vm491, %v487, inf
        %493 = vmin.xlane.f32.xlu0 %v492
        %v494 = vpop.xlane.xlu0 %493
        %v495 = vcvt.f32.s32 %v494
        %v496 = vcvt.f32.s32 %v490
        %v497 = vshll.u32 %v496, 16
        %v498 = vadd.s32 %v497, %v495
        %v499 = vand.u32 %v439, 65535
        %v500 = vshra.s32 %v439, 16
        %v501 = vcvt.s32.f32 %v499
        %v502 = vcvt.s32.f32 %v500
        %503 = vmin.xlane.f32.xlu0 %v502
        %v504 = vpop.xlane.xlu0 %503
        %vm505 = vcmp.eq.f32.partialorder %v502, %v504
        %v506 = vsel %vm505, %v501, inf
        %507 = vmin.xlane.f32.xlu0 %v506
        %v508 = vpop.xlane.xlu0 %507
        %v509 = vcvt.f32.s32 %v508
        %v510 = vcvt.f32.s32 %v504
        %v511 = vshll.u32 %v510, 16
        %v512 = vadd.s32 %v511, %v509
        %v513 = vand.u32 %v440, 65535
        %v514 = vshra.s32 %v440, 16
        %v515 = vcvt.s32.f32 %v513
        %v516 = vcvt.s32.f32 %v514
        %517 = vmin.xlane.f32.xlu0 %v516
        %v518 = vpop.xlane.xlu0 %517
        %vm519 = vcmp.eq.f32.partialorder %v516, %v518
        %v520 = vsel %vm519, %v515, inf
        %521 = vmin.xlane.f32.xlu0 %v520
        %v522 = vpop.xlane.xlu0 %521
        %v523 = vcvt.f32.s32 %v522
        %v524 = vcvt.f32.s32 %v518
        %v525 = vshll.u32 %v524, 16
        %v526 = vadd.s32 %v525, %v523
        %v527 = vand.u32 %v441, 65535
        %v528 = vshra.s32 %v441, 16
        %v529 = vcvt.s32.f32 %v527
        %v530 = vcvt.s32.f32 %v528
        %531 = vmin.xlane.f32.xlu0 %v530
        %v532 = vpop.xlane.xlu0 %531
        %vm533 = vcmp.eq.f32.partialorder %v530, %v532
        %v534 = vsel %vm533, %v529, inf
        %535 = vmin.xlane.f32.xlu0 %v534
        %v536 = vpop.xlane.xlu0 %535
        %v537 = vcvt.f32.s32 %v536
        %v538 = vcvt.f32.s32 %v532
        %v539 = vshll.u32 %v538, 16
        %v540 = vadd.s32 %v539, %v537
        %v541 = vand.u32 %v442, 65535
        %v542 = vshra.s32 %v442, 16
        %v543 = vcvt.s32.f32 %v541
        %v544 = vcvt.s32.f32 %v542
        %545 = vmin.xlane.f32.xlu0 %v544
        %v546 = vpop.xlane.xlu0 %545
        %vm547 = vcmp.eq.f32.partialorder %v544, %v546
        %v548 = vsel %vm547, %v543, inf
        %549 = vmin.xlane.f32.xlu0 %v548
        %v550 = vpop.xlane.xlu0 %549
        %v551 = vcvt.f32.s32 %v550
        %v552 = vcvt.f32.s32 %v546
        %v553 = vshll.u32 %v552, 16
        %v554 = vadd.s32 %v553, %v551
        %v555 = vand.u32 %v456, 127
        %v556 = vand.u32 %v470, 127
        %v557 = vand.u32 %v484, 127
        %v558 = vand.u32 %v498, 127
        %v559 = vand.u32 %v512, 127
        %v560 = vand.u32 %v526, 127
        %v561 = vand.u32 %v540, 127
        %v562 = vand.u32 %v554, 127
        %vm563 = vcmp.eq.s32.totalorder %v289, %v555
        %vm564 = vcmp.eq.s32.totalorder %v289, %v556
        %vm565 = vcmp.eq.s32.totalorder %v289, %v557
        %vm566 = vcmp.eq.s32.totalorder %v289, %v558
        %vm567 = vcmp.eq.s32.totalorder %v289, %v559
        %vm568 = vcmp.eq.s32.totalorder %v289, %v560
        %vm569 = vcmp.eq.s32.totalorder %v289, %v561
        %vm570 = vcmp.eq.s32.totalorder %v289, %v562
        %v571 = vsel %vm563, 1, 0
        %v572 = vsel %vm564, 1, 0
        %v573 = vsel %vm565, 1, 0
        %v574 = vsel %vm566, 1, 0
        %v575 = vsel %vm567, 1, 0
        %v576 = vsel %vm568, 1, 0
        %v577 = vsel %vm569, 1, 0
        %v578 = vsel %vm570, 1, 0
        %v579 = vcvt.s32.f32 %v571
        %v580 = vcvt.s32.f32 %v572
        %v581 = vcvt.s32.f32 %v573
        %v582 = vcvt.s32.f32 %v574
        %v583 = vcvt.s32.f32 %v575
        %v584 = vcvt.s32.f32 %v576
        %v585 = vcvt.s32.f32 %v577
        %v586 = vcvt.s32.f32 %v578
        %v587 = vpack.c.bf16 %v580, %v579
        %v588 = vpack.c.bf16 %v582, %v581
        %v589 = vpack.c.bf16 %v584, %v583
        %v590 = vpack.c.bf16 %v586, %v585
        %v591 = vld [vmem:[%s1] sm:$0xf]
        %v592 = vld [vmem:[%s1 + $0x4] sm:$0xf]
        %v593 = vld [vmem:[%s1 + $0x8] sm:$0xf]
        %v594 = vld [vmem:[%s1 + $0xc] sm:$0xf]
        %v595 = vld [vmem:[%s1 + $0x10] sm:$0xf]
        %v596 = vld [vmem:[%s1 + $0x14] sm:$0xf]
        %v597 = vld [vmem:[%s1 + $0x18] sm:$0xf]
        %v598 = vld [vmem:[%s1 + $0x1c] sm:$0xf]
        %v599 = vld [vmem:[%s1 + $0x20] sm:$0xf]
        %v600 = vld [vmem:[%s1 + $0x24] sm:$0xf]
        %v601 = vld [vmem:[%s1 + $0x28] sm:$0xf]
        %v602 = vld [vmem:[%s1 + $0x2c] sm:$0xf]
        %v603 = vld [vmem:[%s1 + $0x30] sm:$0xf]
        %v604 = vld [vmem:[%s1 + $0x34] sm:$0xf]
        %v605 = vld [vmem:[%s1 + $0x38] sm:$0xf]
        %v606 = vld [vmem:[%s1 + $0x3c] sm:$0xf]
        %v623 = vunpack.c.l.b16 %v591
        %v624 = vunpack.c.l.b16 %v592
        %v625 = vunpack.c.l.b16 %v593
        %v626 = vunpack.c.l.b16 %v594
        %v627 = vunpack.c.l.b16 %v595
        %v628 = vunpack.c.l.b16 %v596
        %v629 = vunpack.c.l.b16 %v597
        %v630 = vunpack.c.l.b16 %v598
        %v631 = vunpack.c.l.b16 %v599
        %v632 = vunpack.c.l.b16 %v600
        %v633 = vunpack.c.l.b16 %v601
        %v634 = vunpack.c.l.b16 %v602
        %v635 = vunpack.c.l.b16 %v603
        %v636 = vunpack.c.l.b16 %v604
        %v637 = vunpack.c.l.b16 %v605
        %v638 = vunpack.c.l.b16 %v606
        %v639 = vpack.c.b16 %v624, %v623
        %v640 = vpack.c.b16 %v626, %v625
        %v641 = vpack.c.b16 %v628, %v627
        %v642 = vpack.c.b16 %v630, %v629
        %v643 = vpack.c.b16 %v632, %v631
        %v644 = vpack.c.b16 %v634, %v633
        %v645 = vpack.c.b16 %v636, %v635
        %v646 = vpack.c.b16 %v638, %v637
        %655 = vmatprep.subr.bf16.mxu0 0
        %656 = vmatpush1.bf16.msra.mxu0 %v639
        %657 = vmatprep.subr.bf16.mxu0 0
        %658 = vmatpush1.bf16.msra.mxu0 %v640
        %659 = vmatprep.subr.bf16.mxu0 0
        %660 = vmatpush1.bf16.msra.mxu0 %v641
        %661 = vmatprep.subr.bf16.mxu0 0
        %662 = vmatpush1.bf16.msra.mxu0 %v642
        %663 = vmatprep.subr.bf16.mxu0 0
        %664 = vmatpush1.bf16.msra.mxu0 %v643
        %665 = vmatprep.subr.bf16.mxu0 0
        %666 = vmatpush1.bf16.msra.mxu0 %v644
        %667 = vmatprep.subr.bf16.mxu0 0
        %668 = vmatpush1.bf16.msra.mxu0 %v645
        %669 = vmatprep.subr.bf16.mxu0 0
        %670 = vmatpush1.bf16.msra.mxu0 %v646
        %671 = vmatprep.subr.bf16.mxu0 0
        %672 = vmatpush1.bf16.msra.mxu0 0
        %673 = vmatprep.subr.bf16.mxu0 0
        %674 = vmatpush1.bf16.msra.mxu0 0
        %675 = vmatprep.subr.bf16.mxu0 0
        %676 = vmatpush1.bf16.msra.mxu0 0
        %677 = vmatprep.subr.bf16.mxu0 0
        %678 = vmatpush1.bf16.msra.mxu0 0
        %679 = vmatprep.subr.bf16.mxu0 0
        %680 = vmatpush1.bf16.msra.mxu0 0
        %681 = vmatprep.subr.bf16.mxu0 0
        %682 = vmatpush1.bf16.msra.mxu0 0
        %683 = vmatprep.subr.bf16.mxu0 0
        %684 = vmatpush1.bf16.msra.mxu0 0
        %685 = vmatprep.subr.bf16.mxu0 0
        %686 = vmatpush1.bf16.msra.mxu0 0
        %687 = vmatprep.mubr.bf16.mxu0 0
        %688 = vmatmul.mubr.bf16.gmra.mrb[0].mxu0 %v587
        %v689 = vpop.f32.mrb[0].mxu0
        %v690 = vadd.f32 0.0, %v689
        %v691 = vpop.f32.mrb[0].mxu0
        %v692 = vpop.f32.mrb[0].mxu0
        %v693 = vadd.f32 0.0, %v692
        %v694 = vpop.f32.mrb[0].mxu0
        %695 = vmatprep.mubr.bf16.mxu0 0
        %696 = vmatmul.mubr.bf16.gmra.mrb[0].mxu0 %v588
        %v697 = vpop.f32.mrb[0].mxu0
        %v698 = vadd.f32 0.0, %v697
        %v699 = vpop.f32.mrb[0].mxu0
        %v700 = vpop.f32.mrb[0].mxu0
        %v701 = vadd.f32 0.0, %v700
        %v702 = vpop.f32.mrb[0].mxu0
        %703 = vmatprep.mubr.bf16.mxu0 0
        %704 = vmatmul.mubr.bf16.gmra.mrb[0].mxu0 %v589
        %v705 = vpop.f32.mrb[0].mxu0
        %v706 = vadd.f32 0.0, %v705
        %v707 = vpop.f32.mrb[0].mxu0
        %v708 = vpop.f32.mrb[0].mxu0
        %v709 = vadd.f32 0.0, %v708
        %v710 = vpop.f32.mrb[0].mxu0
        %711 = vmatprep.mubr.bf16.mxu0 0
        %712 = vmatmul.mubr.bf16.gmra.mrb[0].mxu0 %v590
        %v713 = vpop.f32.mrb[0].mxu0
        %v714 = vadd.f32 0.0, %v713
        %v715 = vpop.f32.mrb[0].mxu0
        %v716 = vpop.f32.mrb[0].mxu0
        %v717 = vadd.f32 0.0, %v716
        %v718 = vpop.f32.mrb[0].mxu0
        %719 = vdwg.mxu0
        %v720 = vsub.f32 %v280, %v690
        %v721 = vsub.f32 %v281, %v693
        %v722 = vsub.f32 %v282, %v698
        %v723 = vsub.f32 %v283, %v701
        %v724 = vsub.f32 %v284, %v706
        %v725 = vsub.f32 %v285, %v709
        %v726 = vsub.f32 %v286, %v714
        %v727 = vsub.f32 %v287, %v717
        %v728 = vmul.f32 %v720, %v720
        %v729 = vmul.f32 %v721, %v721
        %v730 = vmul.f32 %v722, %v722
        %v731 = vmul.f32 %v723, %v723
        %v732 = vmul.f32 %v724, %v724
        %v733 = vmul.f32 %v725, %v725
        %v734 = vmul.f32 %v726, %v726
        %v735 = vmul.f32 %v727, %v727
        %v736 = vsel %vm305, %v728, 0.0
        %737 = vadd.xlane.f32.xlu0 %v736
        %v738 = vpop.xlane.xlu0 %737
        %v739 = vsel %vm305, %v729, 0.0
        %740 = vadd.xlane.f32.xlu0 %v739
        %v741 = vpop.xlane.xlu0 %740
        %v742 = vsel %vm305, %v730, 0.0
        %743 = vadd.xlane.f32.xlu0 %v742
        %v744 = vpop.xlane.xlu0 %743
        %v745 = vsel %vm305, %v731, 0.0
        %746 = vadd.xlane.f32.xlu0 %v745
        %v747 = vpop.xlane.xlu0 %746
        %v748 = vsel %vm305, %v732, 0.0
        %749 = vadd.xlane.f32.xlu0 %v748
        %v750 = vpop.xlane.xlu0 %749
        %v751 = vsel %vm305, %v733, 0.0
        %752 = vadd.xlane.f32.xlu0 %v751
        %v753 = vpop.xlane.xlu0 %752
        %v754 = vsel %vm305, %v734, 0.0
        %755 = vadd.xlane.f32.xlu0 %v754
        %v756 = vpop.xlane.xlu0 %755
        %v757 = vsel %vm305, %v735, 0.0
        %758 = vadd.xlane.f32.xlu0 %v757
        %v759 = vpop.xlane.xlu0 %758
        %v760 = vadd.f32 %v738, %v741
        %v761 = vadd.f32 %v760, %v744
        %v762 = vadd.f32 %v761, %v747
        %v763 = vadd.f32 %v762, %v750
        %v764 = vadd.f32 %v763, %v753
        %v765 = vadd.f32 %v764, %v756
        %v766 = vadd.f32 %v765, %v759
        %v767 = vrot.slane %v766, 4
        %v768 = vadd.f32 %v766, %v767
        %v769 = vrot.slane %v768, 2
        %v770 = vadd.f32 %v768, %v769
        %v771 = vrot.slane %v770, 1
        %v772 = vadd.f32 %v770, %v771
        %vm773 = vcmp.eq.s32.totalorder %v291, 0
        %v774 = vsel %vm773, %v772, 0.0
        %v775 = vadd.f32 %v774, 0.0
        %vm776 = vcmp.eq.s32.totalorder %v289, 0
        %v777 = vsel %vm776, %v555, 0
        %v778 = vsel %vm776, %v556, 0
        %v779 = vsel %vm776, %v557, 0
        %v780 = vsel %vm776, %v558, 0
        %v781 = vsel %vm776, %v559, 0
        %v782 = vsel %vm776, %v560, 0
        %v783 = vsel %vm776, %v561, 0
        %v784 = vsel %vm776, %v562, 0
        %v785 = vpack.c.bf16 %v721, %v720
        %v786 = vpack.c.bf16 %v723, %v722
        %v787 = vpack.c.bf16 %v725, %v724
        %v788 = vpack.c.bf16 %v727, %v726
        %s789 = scalar_lea.vmem %s2, 8
        %v790 = vld [vmem:[%s789] sm:$0xf]
        %v791 = vld [vmem:[%s789 + $0x4] sm:$0xf]
        %v794 = vunpack.c.l.b16 %v790
        %v795 = vunpack.c.l.b16 %v791
        %v796 = vpack.c.b16 %v795, %v794
        %v799 = vsel %vm305, %v785, 0
        %v802 = vsel %vm305, %v786, 0
        %v805 = vsel %vm305, %v787, 0
        %v808 = vsel %vm305, %v788, 0
        %810 = vmatprep.subr.bf16.mxu0 0
        %811 = vmatpush1.bf16.msra.mxu0 %v796
        %812 = vmatprep.subr.bf16.mxu0 0
        %813 = vmatpush1.bf16.msra.mxu0 0
        %814 = vmatprep.subr.bf16.mxu0 0
        %815 = vmatpush1.bf16.msra.mxu0 0
        %816 = vmatprep.subr.bf16.mxu0 0
        %817 = vmatpush1.bf16.msra.mxu0 0
        %818 = vmatprep.subr.bf16.mxu0 0
        %819 = vmatpush1.bf16.msra.mxu0 0
        %820 = vmatprep.subr.bf16.mxu0 0
        %821 = vmatpush1.bf16.msra.mxu0 0
        %822 = vmatprep.subr.bf16.mxu0 0
        %823 = vmatpush1.bf16.msra.mxu0 0
        %824 = vmatprep.subr.bf16.mxu0 0
        %825 = vmatpush1.bf16.msra.mxu0 0
        %826 = vmatprep.subr.bf16.mxu0 0
        %827 = vmatpush1.bf16.msra.mxu0 0
        %828 = vmatprep.subr.bf16.mxu0 0
        %829 = vmatpush1.bf16.msra.mxu0 0
        %830 = vmatprep.subr.bf16.mxu0 0
        %831 = vmatpush1.bf16.msra.mxu0 0
        %832 = vmatprep.subr.bf16.mxu0 0
        %833 = vmatpush1.bf16.msra.mxu0 0
        %834 = vmatprep.subr.bf16.mxu0 0
        %835 = vmatpush1.bf16.msra.mxu0 0
        %836 = vmatprep.subr.bf16.mxu0 0
        %837 = vmatpush1.bf16.msra.mxu0 0
        %838 = vmatprep.subr.bf16.mxu0 0
        %839 = vmatpush1.bf16.msra.mxu0 0
        %840 = vmatprep.subr.bf16.mxu0 0
        %841 = vmatpush1.bf16.msra.mxu0 0
        %842 = vmatprep.mubr.bf16.mxu0 0
        %843 = vmatmul.mubr.bf16.gmra.mrb[0].mxu0 %v799
        %v844 = vpop.f32.mrb[0].mxu0
        %v845 = vadd.f32 0.0, %v844
        %v846 = vpop.f32.mrb[0].mxu0
        %v847 = vpop.f32.mrb[0].mxu0
        %v848 = vadd.f32 0.0, %v847
        %v849 = vpop.f32.mrb[0].mxu0
        %850 = vmatprep.mubr.bf16.mxu0 0
        %851 = vmatmul.mubr.bf16.gmra.mrb[0].mxu0 %v802
        %v852 = vpop.f32.mrb[0].mxu0
        %v853 = vadd.f32 0.0, %v852
        %v854 = vpop.f32.mrb[0].mxu0
        %v855 = vpop.f32.mrb[0].mxu0
        %v856 = vadd.f32 0.0, %v855
        %v857 = vpop.f32.mrb[0].mxu0
        %858 = vmatprep.mubr.bf16.mxu0 0
        %859 = vmatmul.mubr.bf16.gmra.mrb[0].mxu0 %v805
        %v860 = vpop.f32.mrb[0].mxu0
        %v861 = vadd.f32 0.0, %v860
        %v862 = vpop.f32.mrb[0].mxu0
        %v863 = vpop.f32.mrb[0].mxu0
        %v864 = vadd.f32 0.0, %v863
        %v865 = vpop.f32.mrb[0].mxu0
        %866 = vmatprep.mubr.bf16.mxu0 0
        %867 = vmatmul.mubr.bf16.gmra.mrb[0].mxu0 %v808
        %v868 = vpop.f32.mrb[0].mxu0
        %v869 = vadd.f32 0.0, %v868
        %v870 = vpop.f32.mrb[0].mxu0
        %v871 = vpop.f32.mrb[0].mxu0
        %v872 = vadd.f32 0.0, %v871
        %v873 = vpop.f32.mrb[0].mxu0
        %874 = vdwg.mxu0
        %v875 = vlaneseq
        %v876 = vshrl.u32 %v875, 7
        %v877 = vsub.s32 1, %v876
        %v878 = vrot.slane %v292, %v877
        %v879 = vsub.f32 %v878, %v845
        %v880 = vsub.f32 %v878, %v848
        %v881 = vsub.f32 %v878, %v853
        %v882 = vsub.f32 %v878, %v856
        %v883 = vsub.f32 %v878, %v861
        %v884 = vsub.f32 %v878, %v864
        %v885 = vsub.f32 %v878, %v869
        %v886 = vsub.f32 %v878, %v872
        %v895 = vshra.s32 %v879, 31
        %v896 = vshra.s32 %v880, 31
        %v897 = vshra.s32 %v881, 31
        %v898 = vshra.s32 %v882, 31
        %v899 = vshra.s32 %v883, 31
        %v900 = vshra.s32 %v884, 31
        %v901 = vshra.s32 %v885, 31
        %v902 = vshra.s32 %v886, 31
        %v903 = vand.u32 %v895, 2147483647
        %v904 = vand.u32 %v896, 2147483647
        %v905 = vand.u32 %v897, 2147483647
        %v906 = vand.u32 %v898, 2147483647
        %v907 = vand.u32 %v899, 2147483647
        %v908 = vand.u32 %v900, 2147483647
        %v909 = vand.u32 %v901, 2147483647
        %v910 = vand.u32 %v902, 2147483647
        %v911 = vxor.u32 %v879, %v903
        %v912 = vxor.u32 %v880, %v904
        %v913 = vxor.u32 %v881, %v905
        %v914 = vxor.u32 %v882, %v906
        %v915 = vxor.u32 %v883, %v907
        %v916 = vxor.u32 %v884, %v908
        %v917 = vxor.u32 %v885, %v909
        %v918 = vxor.u32 %v886, %v910
        %v919 = vand.u32 %v911, 4294967168
        %v920 = vand.u32 %v912, 4294967168
        %v921 = vand.u32 %v913, 4294967168
        %v922 = vand.u32 %v914, 4294967168
        %v923 = vand.u32 %v915, 4294967168
        %v924 = vand.u32 %v916, 4294967168
        %v925 = vand.u32 %v917, 4294967168
        %v926 = vand.u32 %v918, 4294967168
        %v927 = vor.u32 %v919, %v289
        %v928 = vor.u32 %v920, %v289
        %v929 = vor.u32 %v921, %v289
        %v930 = vor.u32 %v922, %v289
        %v931 = vor.u32 %v923, %v289
        %v932 = vor.u32 %v924, %v289
        %v933 = vor.u32 %v925, %v289
        %v934 = vor.u32 %v926, %v289
        %v935 = vand.u32 %v927, 65535
        %v936 = vshra.s32 %v927, 16
        %v937 = vcvt.s32.f32 %v935
        %v938 = vcvt.s32.f32 %v936
        %939 = vmin.xlane.f32.xlu0 %v938
        %v940 = vpop.xlane.xlu0 %939
        %vm941 = vcmp.eq.f32.partialorder %v938, %v940
        %v942 = vsel %vm941, %v937, inf
        %943 = vmin.xlane.f32.xlu0 %v942
        %v944 = vpop.xlane.xlu0 %943
        %v945 = vcvt.f32.s32 %v944
        %v946 = vcvt.f32.s32 %v940
        %v947 = vshll.u32 %v946, 16
        %v948 = vadd.s32 %v947, %v945
        %v949 = vand.u32 %v928, 65535
        %v950 = vshra.s32 %v928, 16
        %v951 = vcvt.s32.f32 %v949
        %v952 = vcvt.s32.f32 %v950
        %953 = vmin.xlane.f32.xlu0 %v952
        %v954 = vpop.xlane.xlu0 %953
        %vm955 = vcmp.eq.f32.partialorder %v952, %v954
        %v956 = vsel %vm955, %v951, inf
        %957 = vmin.xlane.f32.xlu0 %v956
        %v958 = vpop.xlane.xlu0 %957
        %v959 = vcvt.f32.s32 %v958
        %v960 = vcvt.f32.s32 %v954
        %v961 = vshll.u32 %v960, 16
        %v962 = vadd.s32 %v961, %v959
        %v963 = vand.u32 %v929, 65535
        %v964 = vshra.s32 %v929, 16
        %v965 = vcvt.s32.f32 %v963
        %v966 = vcvt.s32.f32 %v964
        %967 = vmin.xlane.f32.xlu0 %v966
        %v968 = vpop.xlane.xlu0 %967
        %vm969 = vcmp.eq.f32.partialorder %v966, %v968
        %v970 = vsel %vm969, %v965, inf
        %971 = vmin.xlane.f32.xlu0 %v970
        %v972 = vpop.xlane.xlu0 %971
        %v973 = vcvt.f32.s32 %v972
        %v974 = vcvt.f32.s32 %v968
        %v975 = vshll.u32 %v974, 16
        %v976 = vadd.s32 %v975, %v973
        %v977 = vand.u32 %v930, 65535
        %v978 = vshra.s32 %v930, 16
        %v979 = vcvt.s32.f32 %v977
        %v980 = vcvt.s32.f32 %v978
        %981 = vmin.xlane.f32.xlu0 %v980
        %v982 = vpop.xlane.xlu0 %981
        %vm983 = vcmp.eq.f32.partialorder %v980, %v982
        %v984 = vsel %vm983, %v979, inf
        %985 = vmin.xlane.f32.xlu0 %v984
        %v986 = vpop.xlane.xlu0 %985
        %v987 = vcvt.f32.s32 %v986
        %v988 = vcvt.f32.s32 %v982
        %v989 = vshll.u32 %v988, 16
        %v990 = vadd.s32 %v989, %v987
        %v991 = vand.u32 %v931, 65535
        %v992 = vshra.s32 %v931, 16
        %v993 = vcvt.s32.f32 %v991
        %v994 = vcvt.s32.f32 %v992
        %995 = vmin.xlane.f32.xlu0 %v994
        %v996 = vpop.xlane.xlu0 %995
        %vm997 = vcmp.eq.f32.partialorder %v994, %v996
        %v998 = vsel %vm997, %v993, inf
        %999 = vmin.xlane.f32.xlu0 %v998
        %v1000 = vpop.xlane.xlu0 %999
        %v1001 = vcvt.f32.s32 %v1000
        %v1002 = vcvt.f32.s32 %v996
        %v1003 = vshll.u32 %v1002, 16
        %v1004 = vadd.s32 %v1003, %v1001
        %v1005 = vand.u32 %v932, 65535
        %v1006 = vshra.s32 %v932, 16
        %v1007 = vcvt.s32.f32 %v1005
        %v1008 = vcvt.s32.f32 %v1006
        %1009 = vmin.xlane.f32.xlu0 %v1008
        %v1010 = vpop.xlane.xlu0 %1009
        %vm1011 = vcmp.eq.f32.partialorder %v1008, %v1010
        %v1012 = vsel %vm1011, %v1007, inf
        %1013 = vmin.xlane.f32.xlu0 %v1012
        %v1014 = vpop.xlane.xlu0 %1013
        %v1015 = vcvt.f32.s32 %v1014
        %v1016 = vcvt.f32.s32 %v1010
        %v1017 = vshll.u32 %v1016, 16
        %v1018 = vadd.s32 %v1017, %v1015
        %v1019 = vand.u32 %v933, 65535
        %v1020 = vshra.s32 %v933, 16
        %v1021 = vcvt.s32.f32 %v1019
        %v1022 = vcvt.s32.f32 %v1020
        %1023 = vmin.xlane.f32.xlu0 %v1022
        %v1024 = vpop.xlane.xlu0 %1023
        %vm1025 = vcmp.eq.f32.partialorder %v1022, %v1024
        %v1026 = vsel %vm1025, %v1021, inf
        %1027 = vmin.xlane.f32.xlu0 %v1026
        %v1028 = vpop.xlane.xlu0 %1027
        %v1029 = vcvt.f32.s32 %v1028
        %v1030 = vcvt.f32.s32 %v1024
        %v1031 = vshll.u32 %v1030, 16
        %v1032 = vadd.s32 %v1031, %v1029
        %v1033 = vand.u32 %v934, 65535
        %v1034 = vshra.s32 %v934, 16
        %v1035 = vcvt.s32.f32 %v1033
        %v1036 = vcvt.s32.f32 %v1034
        %1037 = vmin.xlane.f32.xlu0 %v1036
        %v1038 = vpop.xlane.xlu0 %1037
        %vm1039 = vcmp.eq.f32.partialorder %v1036, %v1038
        %v1040 = vsel %vm1039, %v1035, inf
        %1041 = vmin.xlane.f32.xlu0 %v1040
        %v1042 = vpop.xlane.xlu0 %1041
        %v1043 = vcvt.f32.s32 %v1042
        %v1044 = vcvt.f32.s32 %v1038
        %v1045 = vshll.u32 %v1044, 16
        %v1046 = vadd.s32 %v1045, %v1043
        %v1047 = vand.u32 %v948, 127
        %v1048 = vand.u32 %v962, 127
        %v1049 = vand.u32 %v976, 127
        %v1050 = vand.u32 %v990, 127
        %v1051 = vand.u32 %v1004, 127
        %v1052 = vand.u32 %v1018, 127
        %v1053 = vand.u32 %v1032, 127
        %v1054 = vand.u32 %v1046, 127
        %vm1055 = vcmp.eq.s32.totalorder %v289, %v1047
        %vm1056 = vcmp.eq.s32.totalorder %v289, %v1048
        %vm1057 = vcmp.eq.s32.totalorder %v289, %v1049
        %vm1058 = vcmp.eq.s32.totalorder %v289, %v1050
        %vm1059 = vcmp.eq.s32.totalorder %v289, %v1051
        %vm1060 = vcmp.eq.s32.totalorder %v289, %v1052
        %vm1061 = vcmp.eq.s32.totalorder %v289, %v1053
        %vm1062 = vcmp.eq.s32.totalorder %v289, %v1054
        %v1063 = vsel %vm1055, 1, 0
        %v1064 = vsel %vm1056, 1, 0
        %v1065 = vsel %vm1057, 1, 0
        %v1066 = vsel %vm1058, 1, 0
        %v1067 = vsel %vm1059, 1, 0
        %v1068 = vsel %vm1060, 1, 0
        %v1069 = vsel %vm1061, 1, 0
        %v1070 = vsel %vm1062, 1, 0
        %v1071 = vcvt.s32.f32 %v1063
        %v1072 = vcvt.s32.f32 %v1064
        %v1073 = vcvt.s32.f32 %v1065
        %v1074 = vcvt.s32.f32 %v1066
        %v1075 = vcvt.s32.f32 %v1067
        %v1076 = vcvt.s32.f32 %v1068
        %v1077 = vcvt.s32.f32 %v1069
        %v1078 = vcvt.s32.f32 %v1070
        %v1079 = vpack.c.bf16 %v1072, %v1071
        %v1080 = vpack.c.bf16 %v1074, %v1073
        %v1081 = vpack.c.bf16 %v1076, %v1075
        %v1082 = vpack.c.bf16 %v1078, %v1077
        %s1083 = scalar_lea.vmem %s1, 64
        %v1084 = vld [vmem:[%s1083] sm:$0xf]
        %v1085 = vld [vmem:[%s1083 + $0x4] sm:$0xf]
        %v1086 = vld [vmem:[%s1083 + $0x8] sm:$0xf]
        %v1087 = vld [vmem:[%s1083 + $0xc] sm:$0xf]
        %v1088 = vld [vmem:[%s1083 + $0x10] sm:$0xf]
        %v1089 = vld [vmem:[%s1083 + $0x14] sm:$0xf]
        %v1090 = vld [vmem:[%s1083 + $0x18] sm:$0xf]
        %v1091 = vld [vmem:[%s1083 + $0x1c] sm:$0xf]
        %v1092 = vld [vmem:[%s1083 + $0x20] sm:$0xf]
        %v1093 = vld [vmem:[%s1083 + $0x24] sm:$0xf]
        %v1094 = vld [vmem:[%s1083 + $0x28] sm:$0xf]
        %v1095 = vld [vmem:[%s1083 + $0x2c] sm:$0xf]
        %v1096 = vld [vmem:[%s1083 + $0x30] sm:$0xf]
        %v1097 = vld [vmem:[%s1083 + $0x34] sm:$0xf]
        %v1098 = vld [vmem:[%s1083 + $0x38] sm:$0xf]
        %v1099 = vld [vmem:[%s1083 + $0x3c] sm:$0xf]
        %v1116 = vunpack.c.l.b16 %v1084
        %v1117 = vunpack.c.l.b16 %v1085
        %v1118 = vunpack.c.l.b16 %v1086
        %v1119 = vunpack.c.l.b16 %v1087
        %v1120 = vunpack.c.l.b16 %v1088
        %v1121 = vunpack.c.l.b16 %v1089
        %v1122 = vunpack.c.l.b16 %v1090
        %v1123 = vunpack.c.l.b16 %v1091
        %v1124 = vunpack.c.l.b16 %v1092
        %v1125 = vunpack.c.l.b16 %v1093
        %v1126 = vunpack.c.l.b16 %v1094
        %v1127 = vunpack.c.l.b16 %v1095
        %v1128 = vunpack.c.l.b16 %v1096
        %v1129 = vunpack.c.l.b16 %v1097
        %v1130 = vunpack.c.l.b16 %v1098
        %v1131 = vunpack.c.l.b16 %v1099
        %v1132 = vpack.c.b16 %v1117, %v1116
        %v1133 = vpack.c.b16 %v1119, %v1118
        %v1134 = vpack.c.b16 %v1121, %v1120
        %v1135 = vpack.c.b16 %v1123, %v1122
        %v1136 = vpack.c.b16 %v1125, %v1124
        %v1137 = vpack.c.b16 %v1127, %v1126
        %v1138 = vpack.c.b16 %v1129, %v1128
        %v1139 = vpack.c.b16 %v1131, %v1130
        %1148 = vmatprep.subr.bf16.mxu0 0
        %1149 = vmatpush1.bf16.msra.mxu0 %v1132
        %1150 = vmatprep.subr.bf16.mxu0 0
        %1151 = vmatpush1.bf16.msra.mxu0 %v1133
        %1152 = vmatprep.subr.bf16.mxu0 0
        %1153 = vmatpush1.bf16.msra.mxu0 %v1134
        %1154 = vmatprep.subr.bf16.mxu0 0
        %1155 = vmatpush1.bf16.msra.mxu0 %v1135
        %1156 = vmatprep.subr.bf16.mxu0 0
        %1157 = vmatpush1.bf16.msra.mxu0 %v1136
        %1158 = vmatprep.subr.bf16.mxu0 0
        %1159 = vmatpush1.bf16.msra.mxu0 %v1137
        %1160 = vmatprep.subr.bf16.mxu0 0
        %1161 = vmatpush1.bf16.msra.mxu0 %v1138
        %1162 = vmatprep.subr.bf16.mxu0 0
        %1163 = vmatpush1.bf16.msra.mxu0 %v1139
        %1164 = vmatprep.subr.bf16.mxu0 0
        %1165 = vmatpush1.bf16.msra.mxu0 0
        %1166 = vmatprep.subr.bf16.mxu0 0
        %1167 = vmatpush1.bf16.msra.mxu0 0
        %1168 = vmatprep.subr.bf16.mxu0 0
        %1169 = vmatpush1.bf16.msra.mxu0 0
        %1170 = vmatprep.subr.bf16.mxu0 0
        %1171 = vmatpush1.bf16.msra.mxu0 0
        %1172 = vmatprep.subr.bf16.mxu0 0
        %1173 = vmatpush1.bf16.msra.mxu0 0
        %1174 = vmatprep.subr.bf16.mxu0 0
        %1175 = vmatpush1.bf16.msra.mxu0 0
        %1176 = vmatprep.subr.bf16.mxu0 0
        %1177 = vmatpush1.bf16.msra.mxu0 0
        %1178 = vmatprep.subr.bf16.mxu0 0
        %1179 = vmatpush1.bf16.msra.mxu0 0
        %1180 = vmatprep.mubr.bf16.mxu0 0
        %1181 = vmatmul.mubr.bf16.gmra.mrb[0].mxu0 %v1079
        %v1182 = vpop.f32.mrb[0].mxu0
        %v1183 = vadd.f32 0.0, %v1182
        %v1184 = vpop.f32.mrb[0].mxu0
        %v1185 = vpop.f32.mrb[0].mxu0
        %v1186 = vadd.f32 0.0, %v1185
        %v1187 = vpop.f32.mrb[0].mxu0
        %1188 = vmatprep.mubr.bf16.mxu0 0
        %1189 = vmatmul.mubr.bf16.gmra.mrb[0].mxu0 %v1080
        %v1190 = vpop.f32.mrb[0].mxu0
        %v1191 = vadd.f32 0.0, %v1190
        %v1192 = vpop.f32.mrb[0].mxu0
        %v1193 = vpop.f32.mrb[0].mxu0
        %v1194 = vadd.f32 0.0, %v1193
        %v1195 = vpop.f32.mrb[0].mxu0
        %1196 = vmatprep.mubr.bf16.mxu0 0
        %1197 = vmatmul.mubr.bf16.gmra.mrb[0].mxu0 %v1081
        %v1198 = vpop.f32.mrb[0].mxu0
        %v1199 = vadd.f32 0.0, %v1198
        %v1200 = vpop.f32.mrb[0].mxu0
        %v1201 = vpop.f32.mrb[0].mxu0
        %v1202 = vadd.f32 0.0, %v1201
        %v1203 = vpop.f32.mrb[0].mxu0
        %1204 = vmatprep.mubr.bf16.mxu0 0
        %1205 = vmatmul.mubr.bf16.gmra.mrb[0].mxu0 %v1082
        %v1206 = vpop.f32.mrb[0].mxu0
        %v1207 = vadd.f32 0.0, %v1206
        %v1208 = vpop.f32.mrb[0].mxu0
        %v1209 = vpop.f32.mrb[0].mxu0
        %v1210 = vadd.f32 0.0, %v1209
        %v1211 = vpop.f32.mrb[0].mxu0
        %1212 = vdwg.mxu0
        %v1213 = vsub.f32 %v720, %v1183
        %v1214 = vsub.f32 %v721, %v1186
        %v1215 = vsub.f32 %v722, %v1191
        %v1216 = vsub.f32 %v723, %v1194
        %v1217 = vsub.f32 %v724, %v1199
        %v1218 = vsub.f32 %v725, %v1202
        %v1219 = vsub.f32 %v726, %v1207
        %v1220 = vsub.f32 %v727, %v1210
        %v1221 = vmul.f32 %v1213, %v1213
        %v1222 = vmul.f32 %v1214, %v1214
        %v1223 = vmul.f32 %v1215, %v1215
        %v1224 = vmul.f32 %v1216, %v1216
        %v1225 = vmul.f32 %v1217, %v1217
        %v1226 = vmul.f32 %v1218, %v1218
        %v1227 = vmul.f32 %v1219, %v1219
        %v1228 = vmul.f32 %v1220, %v1220
        %v1229 = vsel %vm305, %v1221, 0.0
        %1230 = vadd.xlane.f32.xlu0 %v1229
        %v1231 = vpop.xlane.xlu0 %1230
        %v1232 = vsel %vm305, %v1222, 0.0
        %1233 = vadd.xlane.f32.xlu0 %v1232
        %v1234 = vpop.xlane.xlu0 %1233
        %v1235 = vsel %vm305, %v1223, 0.0
        %1236 = vadd.xlane.f32.xlu0 %v1235
        %v1237 = vpop.xlane.xlu0 %1236
        %v1238 = vsel %vm305, %v1224, 0.0
        %1239 = vadd.xlane.f32.xlu0 %v1238
        %v1240 = vpop.xlane.xlu0 %1239
        %v1241 = vsel %vm305, %v1225, 0.0
        %1242 = vadd.xlane.f32.xlu0 %v1241
        %v1243 = vpop.xlane.xlu0 %1242
        %v1244 = vsel %vm305, %v1226, 0.0
        %1245 = vadd.xlane.f32.xlu0 %v1244
        %v1246 = vpop.xlane.xlu0 %1245
        %v1247 = vsel %vm305, %v1227, 0.0
        %1248 = vadd.xlane.f32.xlu0 %v1247
        %v1249 = vpop.xlane.xlu0 %1248
        %v1250 = vsel %vm305, %v1228, 0.0
        %1251 = vadd.xlane.f32.xlu0 %v1250
        %v1252 = vpop.xlane.xlu0 %1251
        %v1253 = vadd.f32 %v1231, %v1234
        %v1254 = vadd.f32 %v1253, %v1237
        %v1255 = vadd.f32 %v1254, %v1240
        %v1256 = vadd.f32 %v1255, %v1243
        %v1257 = vadd.f32 %v1256, %v1246
        %v1258 = vadd.f32 %v1257, %v1249
        %v1259 = vadd.f32 %v1258, %v1252
        %v1260 = vrot.slane %v1259, 4
        %v1261 = vadd.f32 %v1259, %v1260
        %v1262 = vrot.slane %v1261, 2
        %v1263 = vadd.f32 %v1261, %v1262
        %v1264 = vrot.slane %v1263, 1
        %v1265 = vadd.f32 %v1263, %v1264
        %vm1266 = vcmp.eq.s32.totalorder %v291, 1
        %v1267 = vsel %vm1266, %v1265, 0.0
        %v1268 = vadd.f32 %v775, %v1267
        %vm1269 = vcmp.eq.s32.totalorder %v289, 1
        %v1270 = vsel %vm1269, %v1047, %v777
        %v1271 = vsel %vm1269, %v1048, %v778
        %v1272 = vsel %vm1269, %v1049, %v779
        %v1273 = vsel %vm1269, %v1050, %v780
        %v1274 = vsel %vm1269, %v1051, %v781
        %v1275 = vsel %vm1269, %v1052, %v782
        %v1276 = vsel %vm1269, %v1053, %v783
        %v1277 = vsel %vm1269, %v1054, %v784
        %v1278 = vpack.c.bf16 %v1214, %v1213
        %v1279 = vpack.c.bf16 %v1216, %v1215
        %v1280 = vpack.c.bf16 %v1218, %v1217
        %v1281 = vpack.c.bf16 %v1220, %v1219
        %s1282 = scalar_lea.vmem %s2, 16
        %v1283 = vld [vmem:[%s1282] sm:$0xf]
        %v1284 = vld [vmem:[%s1282 + $0x4] sm:$0xf]
        %v1287 = vunpack.c.l.b16 %v1283
        %v1288 = vunpack.c.l.b16 %v1284
        %v1289 = vpack.c.b16 %v1288, %v1287
        %v1292 = vsel %vm305, %v1278, 0
        %v1295 = vsel %vm305, %v1279, 0
        %v1298 = vsel %vm305, %v1280, 0
        %v1301 = vsel %vm305, %v1281, 0
        %1303 = vmatprep.subr.bf16.mxu0 0
        %1304 = vmatpush1.bf16.msra.mxu0 %v1289
        %1305 = vmatprep.subr.bf16.mxu0 0
        %1306 = vmatpush1.bf16.msra.mxu0 0
        %1307 = vmatprep.subr.bf16.mxu0 0
        %1308 = vmatpush1.bf16.msra.mxu0 0
        %1309 = vmatprep.subr.bf16.mxu0 0
        %1310 = vmatpush1.bf16.msra.mxu0 0
        %1311 = vmatprep.subr.bf16.mxu0 0
        %1312 = vmatpush1.bf16.msra.mxu0 0
        %1313 = vmatprep.subr.bf16.mxu0 0
        %1314 = vmatpush1.bf16.msra.mxu0 0
        %1315 = vmatprep.subr.bf16.mxu0 0
        %1316 = vmatpush1.bf16.msra.mxu0 0
        %1317 = vmatprep.subr.bf16.mxu0 0
        %1318 = vmatpush1.bf16.msra.mxu0 0
        %1319 = vmatprep.subr.bf16.mxu0 0
        %1320 = vmatpush1.bf16.msra.mxu0 0
        %1321 = vmatprep.subr.bf16.mxu0 0
        %1322 = vmatpush1.bf16.msra.mxu0 0
        %1323 = vmatprep.subr.bf16.mxu0 0
        %1324 = vmatpush1.bf16.msra.mxu0 0
        %1325 = vmatprep.subr.bf16.mxu0 0
        %1326 = vmatpush1.bf16.msra.mxu0 0
        %1327 = vmatprep.subr.bf16.mxu0 0
        %1328 = vmatpush1.bf16.msra.mxu0 0
        %1329 = vmatprep.subr.bf16.mxu0 0
        %1330 = vmatpush1.bf16.msra.mxu0 0
        %1331 = vmatprep.subr.bf16.mxu0 0
        %1332 = vmatpush1.bf16.msra.mxu0 0
        %1333 = vmatprep.subr.bf16.mxu0 0
        %1334 = vmatpush1.bf16.msra.mxu0 0
        %1335 = vmatprep.mubr.bf16.mxu0 0
        %1336 = vmatmul.mubr.bf16.gmra.mrb[0].mxu0 %v1292
        %v1337 = vpop.f32.mrb[0].mxu0
        %v1338 = vadd.f32 0.0, %v1337
        %v1339 = vpop.f32.mrb[0].mxu0
        %v1340 = vpop.f32.mrb[0].mxu0
        %v1341 = vadd.f32 0.0, %v1340
        %v1342 = vpop.f32.mrb[0].mxu0
        %1343 = vmatprep.mubr.bf16.mxu0 0
        %1344 = vmatmul.mubr.bf16.gmra.mrb[0].mxu0 %v1295
        %v1345 = vpop.f32.mrb[0].mxu0
        %v1346 = vadd.f32 0.0, %v1345
        %v1347 = vpop.f32.mrb[0].mxu0
        %v1348 = vpop.f32.mrb[0].mxu0
        %v1349 = vadd.f32 0.0, %v1348
        %v1350 = vpop.f32.mrb[0].mxu0
        %1351 = vmatprep.mubr.bf16.mxu0 0
        %1352 = vmatmul.mubr.bf16.gmra.mrb[0].mxu0 %v1298
        %v1353 = vpop.f32.mrb[0].mxu0
        %v1354 = vadd.f32 0.0, %v1353
        %v1355 = vpop.f32.mrb[0].mxu0
        %v1356 = vpop.f32.mrb[0].mxu0
        %v1357 = vadd.f32 0.0, %v1356
        %v1358 = vpop.f32.mrb[0].mxu0
        %1359 = vmatprep.mubr.bf16.mxu0 0
        %1360 = vmatmul.mubr.bf16.gmra.mrb[0].mxu0 %v1301
        %v1361 = vpop.f32.mrb[0].mxu0
        %v1362 = vadd.f32 0.0, %v1361
        %v1363 = vpop.f32.mrb[0].mxu0
        %v1364 = vpop.f32.mrb[0].mxu0
        %v1365 = vadd.f32 0.0, %v1364
        %v1366 = vpop.f32.mrb[0].mxu0
        %1367 = vdwg.mxu0
        %v1368 = vlaneseq
        %v1369 = vshrl.u32 %v1368, 7
        %v1370 = vsub.s32 2, %v1369
        %v1371 = vrot.slane %v292, %v1370
        %v1372 = vsub.f32 %v1371, %v1338
        %v1373 = vsub.f32 %v1371, %v1341
        %v1374 = vsub.f32 %v1371, %v1346
        %v1375 = vsub.f32 %v1371, %v1349
        %v1376 = vsub.f32 %v1371, %v1354
        %v1377 = vsub.f32 %v1371, %v1357
        %v1378 = vsub.f32 %v1371, %v1362
        %v1379 = vsub.f32 %v1371, %v1365
        %v1388 = vshra.s32 %v1372, 31
        %v1389 = vshra.s32 %v1373, 31
        %v1390 = vshra.s32 %v1374, 31
        %v1391 = vshra.s32 %v1375, 31
        %v1392 = vshra.s32 %v1376, 31
        %v1393 = vshra.s32 %v1377, 31
        %v1394 = vshra.s32 %v1378, 31
        %v1395 = vshra.s32 %v1379, 31
        %v1396 = vand.u32 %v1388, 2147483647
        %v1397 = vand.u32 %v1389, 2147483647
        %v1398 = vand.u32 %v1390, 2147483647
        %v1399 = vand.u32 %v1391, 2147483647
        %v1400 = vand.u32 %v1392, 2147483647
        %v1401 = vand.u32 %v1393, 2147483647
        %v1402 = vand.u32 %v1394, 2147483647
        %v1403 = vand.u32 %v1395, 2147483647
        %v1404 = vxor.u32 %v1372, %v1396
        %v1405 = vxor.u32 %v1373, %v1397
        %v1406 = vxor.u32 %v1374, %v1398
        %v1407 = vxor.u32 %v1375, %v1399
        %v1408 = vxor.u32 %v1376, %v1400
        %v1409 = vxor.u32 %v1377, %v1401
        %v1410 = vxor.u32 %v1378, %v1402
        %v1411 = vxor.u32 %v1379, %v1403
        %v1412 = vand.u32 %v1404, 4294967168
        %v1413 = vand.u32 %v1405, 4294967168
        %v1414 = vand.u32 %v1406, 4294967168
        %v1415 = vand.u32 %v1407, 4294967168
        %v1416 = vand.u32 %v1408, 4294967168
        %v1417 = vand.u32 %v1409, 4294967168
        %v1418 = vand.u32 %v1410, 4294967168
        %v1419 = vand.u32 %v1411, 4294967168
        %v1420 = vor.u32 %v1412, %v289
        %v1421 = vor.u32 %v1413, %v289
        %v1422 = vor.u32 %v1414, %v289
        %v1423 = vor.u32 %v1415, %v289
        %v1424 = vor.u32 %v1416, %v289
        %v1425 = vor.u32 %v1417, %v289
        %v1426 = vor.u32 %v1418, %v289
        %v1427 = vor.u32 %v1419, %v289
        %v1428 = vand.u32 %v1420, 65535
        %v1429 = vshra.s32 %v1420, 16
        %v1430 = vcvt.s32.f32 %v1428
        %v1431 = vcvt.s32.f32 %v1429
        %1432 = vmin.xlane.f32.xlu0 %v1431
        %v1433 = vpop.xlane.xlu0 %1432
        %vm1434 = vcmp.eq.f32.partialorder %v1431, %v1433
        %v1435 = vsel %vm1434, %v1430, inf
        %1436 = vmin.xlane.f32.xlu0 %v1435
        %v1437 = vpop.xlane.xlu0 %1436
        %v1438 = vcvt.f32.s32 %v1437
        %v1439 = vcvt.f32.s32 %v1433
        %v1440 = vshll.u32 %v1439, 16
        %v1441 = vadd.s32 %v1440, %v1438
        %v1442 = vand.u32 %v1421, 65535
        %v1443 = vshra.s32 %v1421, 16
        %v1444 = vcvt.s32.f32 %v1442
        %v1445 = vcvt.s32.f32 %v1443
        %1446 = vmin.xlane.f32.xlu0 %v1445
        %v1447 = vpop.xlane.xlu0 %1446
        %vm1448 = vcmp.eq.f32.partialorder %v1445, %v1447
        %v1449 = vsel %vm1448, %v1444, inf
        %1450 = vmin.xlane.f32.xlu0 %v1449
        %v1451 = vpop.xlane.xlu0 %1450
        %v1452 = vcvt.f32.s32 %v1451
        %v1453 = vcvt.f32.s32 %v1447
        %v1454 = vshll.u32 %v1453, 16
        %v1455 = vadd.s32 %v1454, %v1452
        %v1456 = vand.u32 %v1422, 65535
        %v1457 = vshra.s32 %v1422, 16
        %v1458 = vcvt.s32.f32 %v1456
        %v1459 = vcvt.s32.f32 %v1457
        %1460 = vmin.xlane.f32.xlu0 %v1459
        %v1461 = vpop.xlane.xlu0 %1460
        %vm1462 = vcmp.eq.f32.partialorder %v1459, %v1461
        %v1463 = vsel %vm1462, %v1458, inf
        %1464 = vmin.xlane.f32.xlu0 %v1463
        %v1465 = vpop.xlane.xlu0 %1464
        %v1466 = vcvt.f32.s32 %v1465
        %v1467 = vcvt.f32.s32 %v1461
        %v1468 = vshll.u32 %v1467, 16
        %v1469 = vadd.s32 %v1468, %v1466
        %v1470 = vand.u32 %v1423, 65535
        %v1471 = vshra.s32 %v1423, 16
        %v1472 = vcvt.s32.f32 %v1470
        %v1473 = vcvt.s32.f32 %v1471
        %1474 = vmin.xlane.f32.xlu0 %v1473
        %v1475 = vpop.xlane.xlu0 %1474
        %vm1476 = vcmp.eq.f32.partialorder %v1473, %v1475
        %v1477 = vsel %vm1476, %v1472, inf
        %1478 = vmin.xlane.f32.xlu0 %v1477
        %v1479 = vpop.xlane.xlu0 %1478
        %v1480 = vcvt.f32.s32 %v1479
        %v1481 = vcvt.f32.s32 %v1475
        %v1482 = vshll.u32 %v1481, 16
        %v1483 = vadd.s32 %v1482, %v1480
        %v1484 = vand.u32 %v1424, 65535
        %v1485 = vshra.s32 %v1424, 16
        %v1486 = vcvt.s32.f32 %v1484
        %v1487 = vcvt.s32.f32 %v1485
        %1488 = vmin.xlane.f32.xlu0 %v1487
        %v1489 = vpop.xlane.xlu0 %1488
        %vm1490 = vcmp.eq.f32.partialorder %v1487, %v1489
        %v1491 = vsel %vm1490, %v1486, inf
        %1492 = vmin.xlane.f32.xlu0 %v1491
        %v1493 = vpop.xlane.xlu0 %1492
        %v1494 = vcvt.f32.s32 %v1493
        %v1495 = vcvt.f32.s32 %v1489
        %v1496 = vshll.u32 %v1495, 16
        %v1497 = vadd.s32 %v1496, %v1494
        %v1498 = vand.u32 %v1425, 65535
        %v1499 = vshra.s32 %v1425, 16
        %v1500 = vcvt.s32.f32 %v1498
        %v1501 = vcvt.s32.f32 %v1499
        %1502 = vmin.xlane.f32.xlu0 %v1501
        %v1503 = vpop.xlane.xlu0 %1502
        %vm1504 = vcmp.eq.f32.partialorder %v1501, %v1503
        %v1505 = vsel %vm1504, %v1500, inf
        %1506 = vmin.xlane.f32.xlu0 %v1505
        %v1507 = vpop.xlane.xlu0 %1506
        %v1508 = vcvt.f32.s32 %v1507
        %v1509 = vcvt.f32.s32 %v1503
        %v1510 = vshll.u32 %v1509, 16
        %v1511 = vadd.s32 %v1510, %v1508
        %v1512 = vand.u32 %v1426, 65535
        %v1513 = vshra.s32 %v1426, 16
        %v1514 = vcvt.s32.f32 %v1512
        %v1515 = vcvt.s32.f32 %v1513
        %1516 = vmin.xlane.f32.xlu0 %v1515
        %v1517 = vpop.xlane.xlu0 %1516
        %vm1518 = vcmp.eq.f32.partialorder %v1515, %v1517
        %v1519 = vsel %vm1518, %v1514, inf
        %1520 = vmin.xlane.f32.xlu0 %v1519
        %v1521 = vpop.xlane.xlu0 %1520
        %v1522 = vcvt.f32.s32 %v1521
        %v1523 = vcvt.f32.s32 %v1517
        %v1524 = vshll.u32 %v1523, 16
        %v1525 = vadd.s32 %v1524, %v1522
        %v1526 = vand.u32 %v1427, 65535
        %v1527 = vshra.s32 %v1427, 16
        %v1528 = vcvt.s32.f32 %v1526
        %v1529 = vcvt.s32.f32 %v1527
        %1530 = vmin.xlane.f32.xlu0 %v1529
        %v1531 = vpop.xlane.xlu0 %1530
        %vm1532 = vcmp.eq.f32.partialorder %v1529, %v1531
        %v1533 = vsel %vm1532, %v1528, inf
        %1534 = vmin.xlane.f32.xlu0 %v1533
        %v1535 = vpop.xlane.xlu0 %1534
        %v1536 = vcvt.f32.s32 %v1535
        %v1537 = vcvt.f32.s32 %v1531
        %v1538 = vshll.u32 %v1537, 16
        %v1539 = vadd.s32 %v1538, %v1536
        %v1540 = vand.u32 %v1441, 127
        %v1541 = vand.u32 %v1455, 127
        %v1542 = vand.u32 %v1469, 127
        %v1543 = vand.u32 %v1483, 127
        %v1544 = vand.u32 %v1497, 127
        %v1545 = vand.u32 %v1511, 127
        %v1546 = vand.u32 %v1525, 127
        %v1547 = vand.u32 %v1539, 127
        %vm1548 = vcmp.eq.s32.totalorder %v289, %v1540
        %vm1549 = vcmp.eq.s32.totalorder %v289, %v1541
        %vm1550 = vcmp.eq.s32.totalorder %v289, %v1542
        %vm1551 = vcmp.eq.s32.totalorder %v289, %v1543
        %vm1552 = vcmp.eq.s32.totalorder %v289, %v1544
        %vm1553 = vcmp.eq.s32.totalorder %v289, %v1545
        %vm1554 = vcmp.eq.s32.totalorder %v289, %v1546
        %vm1555 = vcmp.eq.s32.totalorder %v289, %v1547
        %v1556 = vsel %vm1548, 1, 0
        %v1557 = vsel %vm1549, 1, 0
        %v1558 = vsel %vm1550, 1, 0
        %v1559 = vsel %vm1551, 1, 0
        %v1560 = vsel %vm1552, 1, 0
        %v1561 = vsel %vm1553, 1, 0
        %v1562 = vsel %vm1554, 1, 0
        %v1563 = vsel %vm1555, 1, 0
        %v1564 = vcvt.s32.f32 %v1556
        %v1565 = vcvt.s32.f32 %v1557
        %v1566 = vcvt.s32.f32 %v1558
        %v1567 = vcvt.s32.f32 %v1559
        %v1568 = vcvt.s32.f32 %v1560
        %v1569 = vcvt.s32.f32 %v1561
        %v1570 = vcvt.s32.f32 %v1562
        %v1571 = vcvt.s32.f32 %v1563
        %v1572 = vpack.c.bf16 %v1565, %v1564
        %v1573 = vpack.c.bf16 %v1567, %v1566
        %v1574 = vpack.c.bf16 %v1569, %v1568
        %v1575 = vpack.c.bf16 %v1571, %v1570
        %s1576 = scalar_lea.vmem %s1, 128
        %v1577 = vld [vmem:[%s1576] sm:$0xf]
        %v1578 = vld [vmem:[%s1576 + $0x4] sm:$0xf]
        %v1579 = vld [vmem:[%s1576 + $0x8] sm:$0xf]
        %v1580 = vld [vmem:[%s1576 + $0xc] sm:$0xf]
        %v1581 = vld [vmem:[%s1576 + $0x10] sm:$0xf]
        %v1582 = vld [vmem:[%s1576 + $0x14] sm:$0xf]
        %v1583 = vld [vmem:[%s1576 + $0x18] sm:$0xf]
        %v1584 = vld [vmem:[%s1576 + $0x1c] sm:$0xf]
        %v1585 = vld [vmem:[%s1576 + $0x20] sm:$0xf]
        %v1586 = vld [vmem:[%s1576 + $0x24] sm:$0xf]
        %v1587 = vld [vmem:[%s1576 + $0x28] sm:$0xf]
        %v1588 = vld [vmem:[%s1576 + $0x2c] sm:$0xf]
        %v1589 = vld [vmem:[%s1576 + $0x30] sm:$0xf]
        %v1590 = vld [vmem:[%s1576 + $0x34] sm:$0xf]
        %v1591 = vld [vmem:[%s1576 + $0x38] sm:$0xf]
        %v1592 = vld [vmem:[%s1576 + $0x3c] sm:$0xf]
        %v1609 = vunpack.c.l.b16 %v1577
        %v1610 = vunpack.c.l.b16 %v1578
        %v1611 = vunpack.c.l.b16 %v1579
        %v1612 = vunpack.c.l.b16 %v1580
        %v1613 = vunpack.c.l.b16 %v1581
        %v1614 = vunpack.c.l.b16 %v1582
        %v1615 = vunpack.c.l.b16 %v1583
        %v1616 = vunpack.c.l.b16 %v1584
        %v1617 = vunpack.c.l.b16 %v1585
        %v1618 = vunpack.c.l.b16 %v1586
        %v1619 = vunpack.c.l.b16 %v1587
        %v1620 = vunpack.c.l.b16 %v1588
        %v1621 = vunpack.c.l.b16 %v1589
        %v1622 = vunpack.c.l.b16 %v1590
        %v1623 = vunpack.c.l.b16 %v1591
        %v1624 = vunpack.c.l.b16 %v1592
        %v1625 = vpack.c.b16 %v1610, %v1609
        %v1626 = vpack.c.b16 %v1612, %v1611
        %v1627 = vpack.c.b16 %v1614, %v1613
        %v1628 = vpack.c.b16 %v1616, %v1615
        %v1629 = vpack.c.b16 %v1618, %v1617
        %v1630 = vpack.c.b16 %v1620, %v1619
        %v1631 = vpack.c.b16 %v1622, %v1621
        %v1632 = vpack.c.b16 %v1624, %v1623
        %1641 = vmatprep.subr.bf16.mxu0 0
        %1642 = vmatpush1.bf16.msra.mxu0 %v1625
        %1643 = vmatprep.subr.bf16.mxu0 0
        %1644 = vmatpush1.bf16.msra.mxu0 %v1626
        %1645 = vmatprep.subr.bf16.mxu0 0
        %1646 = vmatpush1.bf16.msra.mxu0 %v1627
        %1647 = vmatprep.subr.bf16.mxu0 0
        %1648 = vmatpush1.bf16.msra.mxu0 %v1628
        %1649 = vmatprep.subr.bf16.mxu0 0
        %1650 = vmatpush1.bf16.msra.mxu0 %v1629
        %1651 = vmatprep.subr.bf16.mxu0 0
        %1652 = vmatpush1.bf16.msra.mxu0 %v1630
        %1653 = vmatprep.subr.bf16.mxu0 0
        %1654 = vmatpush1.bf16.msra.mxu0 %v1631
        %1655 = vmatprep.subr.bf16.mxu0 0
        %1656 = vmatpush1.bf16.msra.mxu0 %v1632
        %1657 = vmatprep.subr.bf16.mxu0 0
        %1658 = vmatpush1.bf16.msra.mxu0 0
        %1659 = vmatprep.subr.bf16.mxu0 0
        %1660 = vmatpush1.bf16.msra.mxu0 0
        %1661 = vmatprep.subr.bf16.mxu0 0
        %1662 = vmatpush1.bf16.msra.mxu0 0
        %1663 = vmatprep.subr.bf16.mxu0 0
        %1664 = vmatpush1.bf16.msra.mxu0 0
        %1665 = vmatprep.subr.bf16.mxu0 0
        %1666 = vmatpush1.bf16.msra.mxu0 0
        %1667 = vmatprep.subr.bf16.mxu0 0
        %1668 = vmatpush1.bf16.msra.mxu0 0
        %1669 = vmatprep.subr.bf16.mxu0 0
        %1670 = vmatpush1.bf16.msra.mxu0 0
        %1671 = vmatprep.subr.bf16.mxu0 0
        %1672 = vmatpush1.bf16.msra.mxu0 0
        %1673 = vmatprep.mubr.bf16.mxu0 0
        %1674 = vmatmul.mubr.bf16.gmra.mrb[0].mxu0 %v1572
        %v1675 = vpop.f32.mrb[0].mxu0
        %v1676 = vadd.f32 0.0, %v1675
        %v1677 = vpop.f32.mrb[0].mxu0
        %v1678 = vpop.f32.mrb[0].mxu0
        %v1679 = vadd.f32 0.0, %v1678
        %v1680 = vpop.f32.mrb[0].mxu0
        %1681 = vmatprep.mubr.bf16.mxu0 0
        %1682 = vmatmul.mubr.bf16.gmra.mrb[0].mxu0 %v1573
        %v1683 = vpop.f32.mrb[0].mxu0
        %v1684 = vadd.f32 0.0, %v1683
        %v1685 = vpop.f32.mrb[0].mxu0
        %v1686 = vpop.f32.mrb[0].mxu0
        %v1687 = vadd.f32 0.0, %v1686
        %v1688 = vpop.f32.mrb[0].mxu0
        %1689 = vmatprep.mubr.bf16.mxu0 0
        %1690 = vmatmul.mubr.bf16.gmra.mrb[0].mxu0 %v1574
        %v1691 = vpop.f32.mrb[0].mxu0
        %v1692 = vadd.f32 0.0, %v1691
        %v1693 = vpop.f32.mrb[0].mxu0
        %v1694 = vpop.f32.mrb[0].mxu0
        %v1695 = vadd.f32 0.0, %v1694
        %v1696 = vpop.f32.mrb[0].mxu0
        %1697 = vmatprep.mubr.bf16.mxu0 0
        %1698 = vmatmul.mubr.bf16.gmra.mrb[0].mxu0 %v1575
        %v1699 = vpop.f32.mrb[0].mxu0
        %v1700 = vadd.f32 0.0, %v1699
        %v1701 = vpop.f32.mrb[0].mxu0
        %v1702 = vpop.f32.mrb[0].mxu0
        %v1703 = vadd.f32 0.0, %v1702
        %v1704 = vpop.f32.mrb[0].mxu0
        %1705 = vdwg.mxu0
        %v1706 = vsub.f32 %v1213, %v1676
        %v1707 = vsub.f32 %v1214, %v1679
        %v1708 = vsub.f32 %v1215, %v1684
        %v1709 = vsub.f32 %v1216, %v1687
        %v1710 = vsub.f32 %v1217, %v1692
        %v1711 = vsub.f32 %v1218, %v1695
        %v1712 = vsub.f32 %v1219, %v1700
        %v1713 = vsub.f32 %v1220, %v1703
        %v1714 = vmul.f32 %v1706, %v1706
        %v1715 = vmul.f32 %v1707, %v1707
        %v1716 = vmul.f32 %v1708, %v1708
        %v1717 = vmul.f32 %v1709, %v1709
        %v1718 = vmul.f32 %v1710, %v1710
        %v1719 = vmul.f32 %v1711, %v1711
        %v1720 = vmul.f32 %v1712, %v1712
        %v1721 = vmul.f32 %v1713, %v1713
        %v1722 = vsel %vm305, %v1714, 0.0
        %1723 = vadd.xlane.f32.xlu0 %v1722
        %v1724 = vpop.xlane.xlu0 %1723
        %v1725 = vsel %vm305, %v1715, 0.0
        %1726 = vadd.xlane.f32.xlu0 %v1725
        %v1727 = vpop.xlane.xlu0 %1726
        %v1728 = vsel %vm305, %v1716, 0.0
        %1729 = vadd.xlane.f32.xlu0 %v1728
        %v1730 = vpop.xlane.xlu0 %1729
        %v1731 = vsel %vm305, %v1717, 0.0
        %1732 = vadd.xlane.f32.xlu0 %v1731
        %v1733 = vpop.xlane.xlu0 %1732
        %v1734 = vsel %vm305, %v1718, 0.0
        %1735 = vadd.xlane.f32.xlu0 %v1734
        %v1736 = vpop.xlane.xlu0 %1735
        %v1737 = vsel %vm305, %v1719, 0.0
        %1738 = vadd.xlane.f32.xlu0 %v1737
        %v1739 = vpop.xlane.xlu0 %1738
        %v1740 = vsel %vm305, %v1720, 0.0
        %1741 = vadd.xlane.f32.xlu0 %v1740
        %v1742 = vpop.xlane.xlu0 %1741
        %v1743 = vsel %vm305, %v1721, 0.0
        %1744 = vadd.xlane.f32.xlu0 %v1743
        %v1745 = vpop.xlane.xlu0 %1744
        %v1746 = vadd.f32 %v1724, %v1727
        %v1747 = vadd.f32 %v1746, %v1730
        %v1748 = vadd.f32 %v1747, %v1733
        %v1749 = vadd.f32 %v1748, %v1736
        %v1750 = vadd.f32 %v1749, %v1739
        %v1751 = vadd.f32 %v1750, %v1742
        %v1752 = vadd.f32 %v1751, %v1745
        %v1753 = vrot.slane %v1752, 4
        %v1754 = vadd.f32 %v1752, %v1753
        %v1755 = vrot.slane %v1754, 2
        %v1756 = vadd.f32 %v1754, %v1755
        %v1757 = vrot.slane %v1756, 1
        %v1758 = vadd.f32 %v1756, %v1757
        %vm1759 = vcmp.eq.s32.totalorder %v291, 2
        %v1760 = vsel %vm1759, %v1758, 0.0
        %v1761 = vadd.f32 %v1268, %v1760
        %vm1762 = vcmp.eq.s32.totalorder %v289, 2
        %v1763 = vsel %vm1762, %v1540, %v1270
        %v1764 = vsel %vm1762, %v1541, %v1271
        %v1765 = vsel %vm1762, %v1542, %v1272
        %v1766 = vsel %vm1762, %v1543, %v1273
        %v1767 = vsel %vm1762, %v1544, %v1274
        %v1768 = vsel %vm1762, %v1545, %v1275
        %v1769 = vsel %vm1762, %v1546, %v1276
        %v1770 = vsel %vm1762, %v1547, %v1277
        %v1771 = vsub.f32 %v280, %v1706
        %v1772 = vsub.f32 %v281, %v1707
        %v1773 = vsub.f32 %v282, %v1708
        %v1774 = vsub.f32 %v283, %v1709
        %v1775 = vsub.f32 %v284, %v1710
        %v1776 = vsub.f32 %v285, %v1711
        %v1777 = vsub.f32 %v286, %v1712
        %v1778 = vsub.f32 %v287, %v1713
        %1779 = vst.msk [vmem:[%s271] sm:$0xff] %vm305, %v1771
        %1780 = vst.msk [vmem:[%s271 + $0x8] sm:$0xff] %vm305, %v1772
        %1781 = vst.msk [vmem:[%s271 + $0x10] sm:$0xff] %vm305, %v1773
        %1782 = vst.msk [vmem:[%s271 + $0x18] sm:$0xff] %vm305, %v1774
        %1783 = vst.msk [vmem:[%s271 + $0x20] sm:$0xff] %vm305, %v1775
        %1784 = vst.msk [vmem:[%s271 + $0x28] sm:$0xff] %vm305, %v1776
        %1785 = vst.msk [vmem:[%s271 + $0x30] sm:$0xff] %vm305, %v1777
        %1786 = vst.msk [vmem:[%s271 + $0x38] sm:$0xff] %vm305, %v1778
        %vm1787 = vcmask 23552
        %1788 = vst.msk [vmem:[%s277] sm:$0xff] %vm1787, %v1763
        %1789 = vst.msk [vmem:[%s277 + $0x8] sm:$0xff] %vm1787, %v1764
        %1790 = vst.msk [vmem:[%s277 + $0x10] sm:$0xff] %vm1787, %v1765
        %1791 = vst.msk [vmem:[%s277 + $0x18] sm:$0xff] %vm1787, %v1766
        %1792 = vst.msk [vmem:[%s277 + $0x20] sm:$0xff] %vm1787, %v1767
        %1793 = vst.msk [vmem:[%s277 + $0x28] sm:$0xff] %vm1787, %v1768
        %1794 = vst.msk [vmem:[%s277 + $0x30] sm:$0xff] %vm1787, %v1769
        %1795 = vst.msk [vmem:[%s277 + $0x38] sm:$0xff] %vm1787, %v1770
        %1796 = vst [vmem:[%s260] sm:$0x7] %v1761
        %s1797 = smul.u32 8, %s21
        %p1798 = scmp.lt.s32.totalorder %s1797, 15
        %s1799 = scalar_select %p1798, %s1797, 15
        %s1800 = smul.addr %s1799, 8
        %s1801 = scalar_lea.vmem %s4, %s1800
        %s1802 = smul.u32 8, %s21
        %p1803 = scmp.lt.s32.totalorder %s1802, 15
        %s1804 = scalar_select %p1803, %s1802, 15
        %s1805 = smul.addr %s1804, 8
        %s1806 = scalar_lea.vmem %s5, %s1805
        %s1807 = sand.u32 %s170, 1
        %s1808 = scalar_lea.sflag [#allocation3], %s1807
        %s1809 = sand.u32 %s170, 1
        %s1810 = smul.addr %s1809, 4
        %s1811 = scalar_lea.vmem [#allocation2], %s1810
        // Predicated region
        $region37: #{tpu_custom_call.1} parent=35 // pred_check
          %p1812 = pneg %p128
        $region38: #{tpu_custom_call.1} parent=35 // pred_check_branch
          %1814 = sbr.rel (%p1812) target = $region40
        $region39: #{tpu_custom_call.1} parent=35 // pred_region
          %s1815 = smul.u32 8, %s21
        $region40: #{tpu_custom_call.1} parent=35 // pred_fallthru
          _
        // Predicated region
        $region41: #{tpu_custom_call.1} parent=35 // pred_check
          %p1816 = pneg %p154
        $region42: #{tpu_custom_call.1} parent=35 // pred_check_branch
          %1818 = sbr.rel (%p1816) target = $region44
        $region43: #{tpu_custom_call.1} parent=35 // pred_region
          %s1819 = smul.u32 8, %s21
        $region44: #{tpu_custom_call.1} parent=35 // pred_fallthru
          _
        // Predicated region
        $region45: #{tpu_custom_call.1} parent=35 // pred_check
          %p1820 = pneg %p180
        $region46: #{tpu_custom_call.1} parent=35 // pred_check_branch
          %1822 = sbr.rel (%p1820) target = $region48
        $region47: #{tpu_custom_call.1} parent=35 // pred_region
          %s1824 = ssub.s32 64, 64
          %1825 = vsyncadd %s1808, %s1824
          %s1826 = smul.addr %s21, 64
          %s1827 = scalar_lea.hbm %s6, %s1826
          %s1829 = sshll.u32 %s1811, 4
          %s1830 = int_to_ptr.vmem [resolvable:$true] %s1829
          %1832 = dma.vmem_to_hbm [thread:$0]  %s1830, 64, %s1827, %s1808
        $region48: #{tpu_custom_call.1} parent=35 // pred_fallthru
          _
      $region36: #{tpu_custom_call.1} parent=5 // pred_fallthru
        _
      %p1833 = scmp.le.s32.totalorder 2, %s16
      // Predicated region
      $region49: #{tpu_custom_call.1} parent=5 // pred_check
        %p1834 = pneg %p1833
      $region50: #{tpu_custom_call.1} parent=5 // pred_check_branch
        %1836 = sbr.rel (%p1834) target = $region52
      $region51: #{tpu_custom_call.1} parent=5 // pred_region
        %s1837 = ssub.s32 %s16, 2
        // Predicated region
        $region53: #{tpu_custom_call.1} parent=51 // pred_check
          %p1838 = pneg %p134
        $region54: #{tpu_custom_call.1} parent=51 // pred_check_branch
          %1840 = sbr.rel (%p1838) target = $region56
        $region55: #{tpu_custom_call.1} parent=51 // pred_region
          %s1841 = smul.u32 8, %s22
          %p1842 = scmp.lt.s32.totalorder %s1841, 15
          %s1843 = scalar_select %p1842, %s1841, 15
          %s1844 = smul.addr %s1843, 8
          %s1845 = scalar_lea.vmem %s4, %s1844
        $region56: #{tpu_custom_call.1} parent=51 // pred_fallthru
          _
        // Predicated region
        $region57: #{tpu_custom_call.1} parent=51 // pred_check
          %p1846 = pneg %p160
        $region58: #{tpu_custom_call.1} parent=51 // pred_check_branch
          %1848 = sbr.rel (%p1846) target = $region60
        $region59: #{tpu_custom_call.1} parent=51 // pred_region
          %s1849 = smul.u32 8, %s22
          %p1850 = scmp.lt.s32.totalorder %s1849, 15
          %s1851 = scalar_select %p1850, %s1849, 15
          %s1852 = smul.addr %s1851, 8
          %s1853 = scalar_lea.vmem %s5, %s1852
        $region60: #{tpu_custom_call.1} parent=51 // pred_fallthru
          _
        // Predicated region
        $region61: #{tpu_custom_call.1} parent=51 // pred_check
          %p1854 = pneg %p186
        $region62: #{tpu_custom_call.1} parent=51 // pred_check_branch
          %1856 = sbr.rel (%p1854) target = $region64
        $region63: #{tpu_custom_call.1} parent=51 // pred_region
          %s1857 = sand.u32 %s171, 1
          %s1858 = scalar_lea.sflag [#allocation3], %s1857
          %s1859 = sand.u32 %s171, 1
          %s1860 = smul.addr %s1859, 4
          %s1861 = scalar_lea.vmem [#allocation2], %s1860
          %1862 = dma.done %s1858, 64
        $region64: #{tpu_custom_call.1} parent=51 // pred_fallthru
          _
      $region52: #{tpu_custom_call.1} parent=5 // pred_fallthru
        _
    $region6: #{tpu_custom_call.1} parent=1 // loop_footer
      %s20 = sadd.s32 1, %s16
    $region7: #{tpu_custom_call.1} parent=1 // loop_footer_branch
      %15 = sbr.rel target = $region3
    $region8: #{tpu_custom_call.1} parent=1 // loop_exit
      _
    %1863 = vsyncpa [#allocation3], 1
    %s1864 = scalar_lea.sflag [#allocation3], 1
    %1865 = vsyncpa %s1864, 1

</llo_original>
